<compile_context>
chip_gen: v6e
topology: v6e:2x2x1
jax: 0.10.0
libtpu: 0.0.40
codegen_flags: <defaults>
</compile_context>

<pallas_src>
import functools
import math

import jax
import jax.numpy as jnp
from jax.experimental import pallas as pl
from jax.experimental.pallas import tpu as pltpu


def _round_up(x, m):
    return ((x + m - 1) // m) * m


# ----------------------------------------------------------------------------
# Fused Pallas kernel: fc1 + relu + fc2(+actions) + relu + output layer.
# ----------------------------------------------------------------------------
def _critic_kernel(sa_ref, w1_ref, b1_ref, w2x_ref, w2a_ref, b2_ref,
                   w3_ref, b3_ref, out_ref, *, mxu_output):
    sa = sa_ref[...]                                       # [TB, KP] bf16

    # fc1 + relu: K=128 MXU matmul (rows of W1' beyond state_dim are zero).
    x1 = jnp.dot(sa, w1_ref[...],
                 preferred_element_type=jnp.float32) + b1_ref[...]
    x1 = jnp.maximum(x1, 0.0)

    # fc2 on concat([x1, actions]) == x1 @ W2x + sa @ W2a' (exact: W2a' rows
    # outside the action columns are zero).  Both terms on the MXU.
    act = jnp.dot(sa, w2a_ref[...], preferred_element_type=jnp.float32)
    x2 = jnp.dot(x1.astype(jnp.bfloat16), w2x_ref[...],
                 preferred_element_type=jnp.float32) + act + b2_ref[...]
    x2 = jnp.maximum(x2, 0.0)

    b3 = b3_ref[0]                                          # SMEM scalar
    if mxu_output:
        # 300 -> 1 as an MXU matmul against W3 padded to 128 output lanes.
        # Lane-dense (TB, 128) output block; column 0 is the Q value.
        out_ref[...] = jnp.dot(x2.astype(jnp.bfloat16), w3_ref[...],
                               preferred_element_type=jnp.float32) + b3
    else:
        # v5e: keep the MXU free for fc2; VPU multiply + lane reduction.
        w3_row = w3_ref[...].astype(jnp.float32)            # [1, H2P]
        out_ref[...] = jnp.sum(x2 * w3_row, axis=-1, keepdims=True) + b3


# ----------------------------------------------------------------------------
# One-time parameter preparation (padding / bf16 cast hoisted out of forward).
# ----------------------------------------------------------------------------
def prepare_params(params, state_dim, action_dim, *, mxu_output=True):
    w1, b1, w2x, w2a, b2, w3, b3 = params                   # logical f32
    H1, H2 = w1.shape[1], w2x.shape[1]
    H1P, H2P = _round_up(H1, 128), _round_up(H2, 128)        # 400->512, 300->384
    KP = _round_up(state_dim + action_dim, 128)              # 20 -> 128
    f32, bf16 = jnp.float32, jnp.bfloat16

    # W1': [KP, H1P], rows [0,S) = W1, rest zero.
    w1p = jnp.zeros((KP, H1P), bf16).at[:state_dim, :H1].set(w1.astype(bf16))
    # W2a': [KP, H2P], rows [S, S+A) = W2a, rest zero.
    w2ap = (jnp.zeros((KP, H2P), bf16)
            .at[state_dim:state_dim + action_dim, :H2].set(w2a.astype(bf16)))
    w2xp = jnp.pad(w2x, ((0, H1P - H1), (0, H2P - H2))).astype(bf16)
    b1p = jnp.pad(b1, ((0, 0), (0, H1P - H1))).astype(f32)
    b2p = jnp.pad(b2, ((0, 0), (0, H2P - H2))).astype(f32)
    if mxu_output:
        # W3 padded to [H2P, 128]; only column 0 is nonzero.
        w3p = jnp.zeros((H2P, 128), bf16).at[:H2, 0].set(w3[:, 0].astype(bf16))
    else:
        w3p = jnp.pad(w3.T, ((0, 0), (0, H2P - H2))).astype(bf16)   # [1, H2P]
    b3p = b3.reshape((1,)).astype(f32)
    return (w1p, b1p, w2xp, w2ap, b2p, w3p, b3p)


def _default_mxu_output():
    """MXU output layer on v6e/v7x (MXU slack); VPU reduce path on v5 chips."""
    try:
        kind = jax.devices()[0].device_kind.lower()
    except Exception:
        return True
    return "v5" not in kind


# ----------------------------------------------------------------------------
# Forward wrapper.
# ----------------------------------------------------------------------------
@functools.partial(jax.jit, static_argnames=("tile_b", "mxu_output"))
def critic_forward(states, actions, prepared, *, tile_b=512, mxu_output=True):
    """states: [B, state_dim], actions: [B, action_dim] -> Q: [B, 1]."""
    B, state_dim = states.shape
    action_dim = actions.shape[1]
    w1p, b1p, w2xp, w2ap, b2p, w3p, b3p = prepared
    KP, H1P = w1p.shape
    H2P = w2xp.shape[1]
    f32, bf16 = jnp.float32, jnp.bfloat16

    # Merge states|actions into one lane-aligned bf16 block (zero-padded tail).
    sa = jnp.pad(jnp.concatenate([states, actions], axis=1).astype(bf16),
                 ((0, 0), (0, KP - state_dim - action_dim)))

    # Batch tile: large (amortize ~0.35us/step) but keep >= 2 grid steps so
    # v7x can shard the batch across its two TensorCores.
    TB = min(tile_b, max(8, _round_up(pl.cdiv(B, 2), 8)))
    grid = (pl.cdiv(B, TB),)

    def batch_spec(d):
        # batch-tiled operands march along the grid (pipelined DMA)
        return pl.BlockSpec((TB, d), lambda i: (i, 0))

    def const_spec(shape):
        # weights/biases: same block every step -> stay resident in VMEM
        return pl.BlockSpec(shape, lambda i: (0, 0))

    n_out = 128 if mxu_output else 1
    kernel = functools.partial(_critic_kernel, mxu_output=mxu_output)

    out = pl.pallas_call(
        kernel,
        out_shape=jax.ShapeDtypeStruct((B, n_out), f32),
        grid=grid,
        in_specs=[
            batch_spec(KP),                                # merged states|actions
            const_spec((KP, H1P)),                         # W1'
            const_spec((1, H1P)),                          # b1
            const_spec((H1P, H2P)),                        # W2x
            const_spec((KP, H2P)),                         # W2a'
            const_spec((1, H2P)),                          # b2
            const_spec(w3p.shape),                         # W3 (padded)
            pl.BlockSpec(memory_space=pltpu.MemorySpace.SMEM),   # b3 scalar
        ],
        out_specs=batch_spec(n_out),
        compiler_params=pltpu.CompilerParams(
            dimension_semantics=("parallel",)),            # megacore on v7x
    )(sa, w1p, b1p, w2xp, w2ap, b2p, w3p, b3p)

    return out[:, :1] if mxu_output else out


# ----------------------------------------------------------------------------
# Deterministic parameter init (mirrors the PyTorch module's init scheme:
# hidden layers ~ U(-1/sqrt(fan_in), 1/sqrt(fan_in)); output weight ~
# U(-3e-3, 3e-3); output bias keeps default Linear init U(-1/sqrt(300), ...)).
# ----------------------------------------------------------------------------
def init_params(key, state_dim, action_dim):
    k1, k2, k3, k4, k5, k6 = jax.random.split(key, 6)
    h1, h2 = 400, 300

    lim1 = 1.0 / math.sqrt(state_dim)
    w1 = jax.random.uniform(k1, (state_dim, h1), jnp.float32, -lim1, lim1)
    b1 = jax.random.uniform(k2, (1, h1), jnp.float32, -lim1, lim1)

    lim2 = 1.0 / math.sqrt(h1 + action_dim)
    w2 = jax.random.uniform(k3, (h1 + action_dim, h2), jnp.float32, -lim2, lim2)
    b2 = jax.random.uniform(k4, (1, h2), jnp.float32, -lim2, lim2)
    w2x = w2[:h1, :]      # part multiplying the fc1 activations
    w2a = w2[h1:, :]      # part multiplying the raw actions

    w3 = jax.random.uniform(k5, (h2, 1), jnp.float32, -0.003, 0.003)
    lim3 = 1.0 / math.sqrt(h2)
    b3 = jax.random.uniform(k6, (1, 1), jnp.float32, -lim3, lim3)

    return (w1, b1, w2x, w2a, b2, w3, b3)


def reference_forward(states, actions, params):
    """Pure-JAX f32 reference of the PyTorch forward (for sanity checking)."""
    w1, b1, w2x, w2a, b2, w3, b3 = params
    x = jnp.maximum(states @ w1 + b1, 0.0)
    w2 = jnp.concatenate([w2x, w2a], axis=0)
    x = jnp.maximum(jnp.concatenate([x, actions], axis=1) @ w2 + b2, 0.0)
    return x @ w3 + b3


if __name__ == "__main__":
    key = jax.random.PRNGKey(0)
    k_params, k_s, k_a, k_s2, k_a2 = jax.random.split(key, 5)

    state_dim, action_dim = 16, 4
    params = init_params(k_params, state_dim, action_dim)

    mxu_out = _default_mxu_output()
    # Pad / cast once (hoisted out of the forward path).
    prepared = prepare_params(params, state_dim, action_dim,
                              mxu_output=mxu_out)
    prepared = jax.tree_util.tree_map(jax.block_until_ready, prepared)

    # Small batch (typical RL inference path).
    batch = 2
    states = jax.random.normal(k_s, (batch, state_dim), jnp.float32)
    actions = jax.random.normal(k_a, (batch, action_dim), jnp.float32)
    q = jax.block_until_ready(
        critic_forward(states, actions, prepared, mxu_output=mxu_out))
    q_ref = reference_forward(states, actions, params)
    assert q.shape == (batch, 1)
    # bf16 weights / bf16 MXU operands -> relaxed tolerance vs f32 reference.
    assert jnp.allclose(q, q_ref, atol=2e-2, rtol=2e-2), \
        float(jnp.max(jnp.abs(q - q_ref)))

    # Larger batch exercises the pipelined / megacore-sharded batch grid.
    batch2 = 512
    states2 = jax.random.normal(k_s2, (batch2, state_dim), jnp.float32)
    actions2 = jax.random.normal(k_a2, (batch2, action_dim), jnp.float32)
    q2 = jax.block_until_ready(
        critic_forward(states2, actions2, prepared, mxu_output=mxu_out))
    q2_ref = reference_forward(states2, actions2, params)
    assert q2.shape == (batch2, 1)
    assert jnp.allclose(q2, q2_ref, atol=2e-2, rtol=2e-2), \
        float(jnp.max(jnp.abs(q2 - q2_ref)))

    print("KERNEL_OK")
</pallas_src>

<mosaic_0001>
module attributes {stable_mosaic.version = 11 : i64} {
  func.func @_critic_kernel(%arg0: i32, %arg1: memref<8x128xbf16, #tpu.memory_space<vmem>>, %arg2: memref<128x512xbf16, #tpu.memory_space<vmem>>, %arg3: memref<1x512xf32, #tpu.memory_space<vmem>>, %arg4: memref<512x384xbf16, #tpu.memory_space<vmem>>, %arg5: memref<128x384xbf16, #tpu.memory_space<vmem>>, %arg6: memref<1x384xf32, #tpu.memory_space<vmem>>, %arg7: memref<384x128xbf16, #tpu.memory_space<vmem>>, %arg8: memref<1xf32, #tpu.memory_space<smem>>, %arg9: memref<8x128xf32, #tpu.memory_space<vmem>>) attributes {dimension_semantics = [#tpu.dimension_semantics<parallel>], iteration_bounds = array<i64: 1>, scalar_prefetch = 0 : i64, scratch_operands = 0 : i64, tpu.core_type = #tpu.core_type<tc>, window_params = [{transform_indices = @transform_0, window_bounds = array<i64: 8, 128>}, {pipeline_mode = #tpu.pipeline_mode<synchronous>, transform_indices = @transform_1, window_bounds = array<i64: 128, 512>}, {pipeline_mode = #tpu.pipeline_mode<synchronous>, transform_indices = @transform_2, window_bounds = array<i64: 1, 512>}, {pipeline_mode = #tpu.pipeline_mode<synchronous>, transform_indices = @transform_3, window_bounds = array<i64: 512, 384>}, {pipeline_mode = #tpu.pipeline_mode<synchronous>, transform_indices = @transform_4, window_bounds = array<i64: 128, 384>}, {pipeline_mode = #tpu.pipeline_mode<synchronous>, transform_indices = @transform_5, window_bounds = array<i64: 1, 384>}, {pipeline_mode = #tpu.pipeline_mode<synchronous>, transform_indices = @transform_6, window_bounds = array<i64: 384, 128>}, {transform_indices = @transform_7, window_bounds = array<i64: 1>}, {transform_indices = @transform_8, window_bounds = array<i64: 8, 128>}]} {
    %c0 = arith.constant 0 : index
    %c0_0 = arith.constant 0 : index
    %0 = vector.load %arg1[%c0, %c0_0] : memref<8x128xbf16, #tpu.memory_space<vmem>>, vector<8x128xbf16>
    %c0_1 = arith.constant 0 : index
    %c0_2 = arith.constant 0 : index
    %1 = vector.load %arg2[%c0_1, %c0_2] : memref<128x512xbf16, #tpu.memory_space<vmem>>, vector<128x512xbf16>
    %cst = arith.constant dense<0.000000e+00> : vector<8x512xf32>
    %2 = tpu.matmul %0, %1, %cst {dimension_numbers = #tpu.dot_dimension_numbers<[1], [0], [0], [1], [0, 0, 1, 1], [], []>} : vector<8x128xbf16>, vector<128x512xbf16>, vector<8x512xf32> -> vector<8x512xf32>
    %c0_3 = arith.constant 0 : index
    %c0_4 = arith.constant 0 : index
    %3 = vector.load %arg3[%c0_3, %c0_4] : memref<1x512xf32, #tpu.memory_space<vmem>>, vector<1x512xf32>
    %4 = vector.broadcast %3 : vector<1x512xf32> to vector<8x512xf32>
    %5 = arith.addf %2, %4 : vector<8x512xf32>
    %cst_5 = arith.constant 0.000000e+00 : f32
    %6 = vector.broadcast %cst_5 : f32 to vector<8x512xf32>
    %7 = arith.maximumf %5, %6 : vector<8x512xf32>
    %c0_6 = arith.constant 0 : index
    %c0_7 = arith.constant 0 : index
    %8 = vector.load %arg5[%c0_6, %c0_7] : memref<128x384xbf16, #tpu.memory_space<vmem>>, vector<128x384xbf16>
    %cst_8 = arith.constant dense<0.000000e+00> : vector<8x384xf32>
    %9 = tpu.matmul %0, %8, %cst_8 {dimension_numbers = #tpu.dot_dimension_numbers<[1], [0], [0], [1], [0, 0, 1, 1], [], []>} : vector<8x128xbf16>, vector<128x384xbf16>, vector<8x384xf32> -> vector<8x384xf32>
    %10 = arith.truncf %7 : vector<8x512xf32> to vector<8x512xbf16>
    %c0_9 = arith.constant 0 : index
    %c0_10 = arith.constant 0 : index
    %11 = vector.load %arg4[%c0_9, %c0_10] : memref<512x384xbf16, #tpu.memory_space<vmem>>, vector<512x384xbf16>
    %cst_11 = arith.constant dense<0.000000e+00> : vector<8x384xf32>
    %12 = tpu.matmul %10, %11, %cst_11 {dimension_numbers = #tpu.dot_dimension_numbers<[1], [0], [0], [1], [0, 0, 1, 1], [], []>} : vector<8x512xbf16>, vector<512x384xbf16>, vector<8x384xf32> -> vector<8x384xf32>
    %13 = arith.addf %12, %9 : vector<8x384xf32>
    %c0_12 = arith.constant 0 : index
    %c0_13 = arith.constant 0 : index
    %14 = vector.load %arg6[%c0_12, %c0_13] : memref<1x384xf32, #tpu.memory_space<vmem>>, vector<1x384xf32>
    %15 = vector.broadcast %14 : vector<1x384xf32> to vector<8x384xf32>
    %16 = arith.addf %13, %15 : vector<8x384xf32>
    %cst_14 = arith.constant 0.000000e+00 : f32
    %17 = vector.broadcast %cst_14 : f32 to vector<8x384xf32>
    %18 = arith.maximumf %16, %17 : vector<8x384xf32>
    %c0_15 = arith.constant 0 : index
    %19 = memref.load %arg8[%c0_15] : memref<1xf32, #tpu.memory_space<smem>>
    %20 = arith.truncf %18 : vector<8x384xf32> to vector<8x384xbf16>
    %c0_16 = arith.constant 0 : index
    %c0_17 = arith.constant 0 : index
    %21 = vector.load %arg7[%c0_16, %c0_17] : memref<384x128xbf16, #tpu.memory_space<vmem>>, vector<384x128xbf16>
    %cst_18 = arith.constant dense<0.000000e+00> : vector<8x128xf32>
    %22 = tpu.matmul %20, %21, %cst_18 {dimension_numbers = #tpu.dot_dimension_numbers<[1], [0], [0], [1], [0, 0, 1, 1], [], []>} : vector<8x384xbf16>, vector<384x128xbf16>, vector<8x128xf32> -> vector<8x128xf32>
    %23 = vector.broadcast %19 : f32 to vector<8x128xf32>
    %24 = arith.addf %22, %23 : vector<8x128xf32>
    %c0_19 = arith.constant 0 : index
    %c0_20 = arith.constant 0 : index
    %25 = vector.load %arg9[%c0_19, %c0_20] : memref<8x128xf32, #tpu.memory_space<vmem>>, vector<8x128xf32>
    tpu.vector_store %arg9[%c0_19, %c0_20], %24 {strides = array<i32>} : memref<8x128xf32, #tpu.memory_space<vmem>>, vector<8x128xf32>,
    return
  }
  func.func @transform_0(%arg0: i32) -> (i32, i32) {
    %c0_i32 = arith.constant 0 : i32
    %c0_i32_0 = arith.constant 0 : i32
    return %arg0, %c0_i32 : i32, i32
  }
  func.func @transform_1(%arg0: i32) -> (i32, i32) {
    %c0_i32 = arith.constant 0 : i32
    %c0_i32_0 = arith.constant 0 : i32
    %c0_i32_1 = arith.constant 0 : i32
    return %c0_i32, %c0_i32_0 : i32, i32
  }
  func.func @transform_2(%arg0: i32) -> (i32, i32) {
    %c0_i32 = arith.constant 0 : i32
    %c0_i32_0 = arith.constant 0 : i32
    %c0_i32_1 = arith.constant 0 : i32
    return %c0_i32, %c0_i32_0 : i32, i32
  }
  func.func @transform_3(%arg0: i32) -> (i32, i32) {
    %c0_i32 = arith.constant 0 : i32
    %c0_i32_0 = arith.constant 0 : i32
    %c0_i32_1 = arith.constant 0 : i32
    return %c0_i32, %c0_i32_0 : i32, i32
  }
  func.func @transform_4(%arg0: i32) -> (i32, i32) {
    %c0_i32 = arith.constant 0 : i32
    %c0_i32_0 = arith.constant 0 : i32
    %c0_i32_1 = arith.constant 0 : i32
    return %c0_i32, %c0_i32_0 : i32, i32
  }
  func.func @transform_5(%arg0: i32) -> (i32, i32) {
    %c0_i32 = arith.constant 0 : i32
    %c0_i32_0 = arith.constant 0 : i32
    %c0_i32_1 = arith.constant 0 : i32
    return %c0_i32, %c0_i32_0 : i32, i32
  }
  func.func @transform_6(%arg0: i32) -> (i32, i32) {
    %c0_i32 = arith.constant 0 : i32
    %c0_i32_0 = arith.constant 0 : i32
    %c0_i32_1 = arith.constant 0 : i32
    return %c0_i32, %c0_i32_0 : i32, i32
  }
  func.func @transform_7(%arg0: i32) -> i32 {
    %c0_i32 = arith.constant 0 : i32
    %c0_i32_0 = arith.constant 0 : i32
    return %c0_i32 : i32
  }
  func.func @transform_8(%arg0: i32) -> (i32, i32) {
    %c0_i32 = arith.constant 0 : i32
    %c0_i32_0 = arith.constant 0 : i32
    return %arg0, %c0_i32 : i32, i32
  }
}

</mosaic_0001>

<llo_original>
// kernel: critic_forward.1
$region0: #{critic_forward.1}
  #allocation0 [shape = 'u32[]', space=smem, size = 0x4, offset = 0x4, fixed_abs, tag = 'smem constant byte address 0x4 - core index']
  #allocation1 [shape = 'u32[144,128]{1,0:T(1,128)}', space=vmem, size = 0x12000, scoped, tag = 'internal scratch']
  #allocation2 [shape = 'f32[1]{0:T(128)S(6)}', space=smem, size = 0x200, scoped, tag = 'scoped memory for critic_forward.1']
  %s0 = inlined_call_operand.vmem [shape: bf16[2,128], index: 0, kind: input, shape index: {}]
  %s1 = inlined_call_operand.hbm [shape: bf16[128,512], index: 1, kind: input, shape index: {}]
  %s2 = inlined_call_operand.vmem [shape: f32[1,512], index: 2, kind: input, shape index: {}]
  %s3 = inlined_call_operand.hbm [shape: bf16[512,384], index: 3, kind: input, shape index: {}]
  %s4 = inlined_call_operand.hbm [shape: bf16[128,384], index: 4, kind: input, shape index: {}]
  %s5 = inlined_call_operand.vmem [shape: f32[1,384], index: 5, kind: input, shape index: {}]
  %s6 = inlined_call_operand.hbm [shape: bf16[384,128], index: 6, kind: input, shape index: {}]
  %s7 = inlined_call_operand.<no memory space> [shape: f32[1], index: 7, kind: input, shape index: {}]
  %s8 = inlined_call_operand.vmem [shape: f32[2,128], index: 8, kind: output, shape index: {}]
  %s9 = sld [smem:[#allocation0]]
  $region88: #{critic_forward.1} parent=0
    _
  %s11 = ssub.s32 1, %s9
  %s12 = scalar_select 0, %s11, %s9
  %13 = sst [smem:[#allocation2]] %s7
  $region1: #{critic_forward.1} parent=0
    #allocation3 [shape = 'u8[131072]{0}', space=vmem, size = 0x20000, scoped, tag = 'input window, operand 1, single buffered']
    #allocation4 [shape = 's32[1]{0}', space=sflag, size = 0x4, scoped, tag = 'scoped memory for critic_forward.1']
    #allocation5 [shape = 'u8[393216]{0}', space=vmem, size = 0x60000, scoped, tag = 'input window, operand 3, single buffered']
    #allocation6 [shape = 's32[1]{0}', space=sflag, size = 0x4, scoped, tag = 'scoped memory for critic_forward.1']
    #allocation7 [shape = 'u8[98304]{0}', space=vmem, size = 0x18000, scoped, tag = 'input window, operand 4, single buffered']
    #allocation8 [shape = 'u8[98304]{0}', space=vmem, size = 0x18000, scoped, tag = 'input window, operand 6, single buffered']
    #allocation9 [shape = 's32[1]{0}', space=sflag, size = 0x4, scoped, tag = 'scoped memory for critic_forward.1']
    #allocation10 [shape = 'u8[4096]{0}', space=vmem, size = 0x1000, scoped, tag = 'output window, operand 0, single buffered']
    %14 = vsyncpa [#allocation4], 0
    %15 = vsyncpa [#allocation6], 0
    %16 = vsyncpa [#allocation9], 0
    // Predicated region
    $region2: #{critic_forward.1} parent=1 // pred_check
      _
    $region3: #{critic_forward.1} parent=1 // pred_check_branch
      %18 = sbr.rel (0) target = $region5
    $region4: #{critic_forward.1} parent=1 // pred_region
      _
    $region5: #{critic_forward.1} parent=1 // pred_fallthru
      _
    // Predicated region
    $region6: #{critic_forward.1} parent=1 // pred_check
      _
    $region7: #{critic_forward.1} parent=1 // pred_check_branch
      %20 = sbr.rel (0) target = $region9
    $region8: #{critic_forward.1} parent=1 // pred_region
      %s22 = ssub.s32 4096, 4096
      %23 = vsyncadd [#allocation4], %s22
      %s24 = sshll.u32 [#allocation3], 4
      %s25 = int_to_ptr.vmem [resolvable:$true] %s24
      %30 = dma.hbm_to_vmem [thread:$0]  %s1, 4096, %s25, [#allocation4], 256, 256, 16
    $region9: #{critic_forward.1} parent=1 // pred_fallthru
      _
    // Predicated region
    $region10: #{critic_forward.1} parent=1 // pred_check
      _
    $region11: #{critic_forward.1} parent=1 // pred_check_branch
      %32 = sbr.rel (0) target = $region13
    $region12: #{critic_forward.1} parent=1 // pred_region
      _
    $region13: #{critic_forward.1} parent=1 // pred_fallthru
      _
    // Predicated region
    $region14: #{critic_forward.1} parent=1 // pred_check
      _
    $region15: #{critic_forward.1} parent=1 // pred_check_branch
      %34 = sbr.rel (0) target = $region17
    $region16: #{critic_forward.1} parent=1 // pred_region
      %s36 = ssub.s32 12288, 12288
      %37 = vsyncadd [#allocation6], %s36
      %s38 = sshll.u32 [#allocation5], 4
      %s39 = int_to_ptr.vmem [resolvable:$true] %s38
      %44 = dma.hbm_to_vmem [thread:$0]  %s3, 12288, %s39, [#allocation6], 192, 192, 12
    $region17: #{critic_forward.1} parent=1 // pred_fallthru
      _
    // Predicated region
    $region18: #{critic_forward.1} parent=1 // pred_check
      _
    $region19: #{critic_forward.1} parent=1 // pred_check_branch
      %46 = sbr.rel (0) target = $region21
    $region20: #{critic_forward.1} parent=1 // pred_region
      %s48 = ssub.s32 3072, 3072
      %49 = vsyncadd [#allocation6], %s48
      %s50 = sshll.u32 [#allocation7], 4
      %s51 = int_to_ptr.vmem [resolvable:$true] %s50
      %56 = dma.hbm_to_vmem [thread:$0]  %s4, 3072, %s51, [#allocation6], 192, 192, 12
    $region21: #{critic_forward.1} parent=1 // pred_fallthru
      _
    // Predicated region
    $region22: #{critic_forward.1} parent=1 // pred_check
      _
    $region23: #{critic_forward.1} parent=1 // pred_check_branch
      %58 = sbr.rel (0) target = $region25
    $region24: #{critic_forward.1} parent=1 // pred_region
      _
    $region25: #{critic_forward.1} parent=1 // pred_fallthru
      _
    // Predicated region
    $region26: #{critic_forward.1} parent=1 // pred_check
      _
    $region27: #{critic_forward.1} parent=1 // pred_check_branch
      %60 = sbr.rel (0) target = $region29
    $region28: #{critic_forward.1} parent=1 // pred_region
      %s62 = ssub.s32 3072, 3072
      %63 = vsyncadd [#allocation9], %s62
      %s64 = sshll.u32 [#allocation8], 4
      %s65 = int_to_ptr.vmem [resolvable:$true] %s64
      %70 = dma.hbm_to_vmem [thread:$0]  %s6, 3072, %s65, [#allocation9], 64, 64, 4
    $region29: #{critic_forward.1} parent=1 // pred_fallthru
      _
    // Predicated region
    $region30: #{critic_forward.1} parent=1 // pred_check
      _
    $region31: #{critic_forward.1} parent=1 // pred_check_branch
      %72 = sbr.rel (0) target = $region33
    $region32: #{critic_forward.1} parent=1 // pred_region
      _
    $region33: #{critic_forward.1} parent=1 // pred_fallthru
      _
    // Predicated region
    $region34: #{critic_forward.1} parent=1 // pred_check
      _
    $region35: #{critic_forward.1} parent=1 // pred_check_branch
      %74 = sbr.rel (0) target = $region37
    $region36: #{critic_forward.1} parent=1 // pred_region
      %75 = dma.done [#allocation4], 4096
    $region37: #{critic_forward.1} parent=1 // pred_fallthru
      _
    // Predicated region
    $region38: #{critic_forward.1} parent=1 // pred_check
      _
    $region39: #{critic_forward.1} parent=1 // pred_check_branch
      %77 = sbr.rel (0) target = $region41
    $region40: #{critic_forward.1} parent=1 // pred_region
      %78 = dma.done [#allocation6], 12288
    $region41: #{critic_forward.1} parent=1 // pred_fallthru
      _
    // Predicated region
    $region42: #{critic_forward.1} parent=1 // pred_check
      _
    $region43: #{critic_forward.1} parent=1 // pred_check_branch
      %80 = sbr.rel (0) target = $region45
    $region44: #{critic_forward.1} parent=1 // pred_region
      %81 = dma.done [#allocation6], 3072
    $region45: #{critic_forward.1} parent=1 // pred_fallthru
      _
    // Predicated region
    $region46: #{critic_forward.1} parent=1 // pred_check
      _
    $region47: #{critic_forward.1} parent=1 // pred_check_branch
      %83 = sbr.rel (0) target = $region49
    $region48: #{critic_forward.1} parent=1 // pred_region
      %84 = dma.done [#allocation9], 3072
    $region49: #{critic_forward.1} parent=1 // pred_fallthru
      _
    %v86 = vld [vmem:[%s0] sm:$0x1]
    %v87 = vld [vmem:[%s0 + $0x1] sm:$0x1]
    %v88 = vld [vmem:[%s0 + $0x2] sm:$0x1]
    %v89 = vld [vmem:[%s0 + $0x3] sm:$0x1]
    %v90 = vld [vmem:[#allocation3] sm:$0xff]
    %v91 = vld [vmem:[#allocation3 + $0x8] sm:$0xff]
    %v92 = vld [vmem:[#allocation3 + $0x10] sm:$0xff]
    %v93 = vld [vmem:[#allocation3 + $0x18] sm:$0xff]
    %v94 = vld [vmem:[#allocation3 + $0x20] sm:$0xff]
    %v95 = vld [vmem:[#allocation3 + $0x28] sm:$0xff]
    %v96 = vld [vmem:[#allocation3 + $0x30] sm:$0xff]
    %v97 = vld [vmem:[#allocation3 + $0x38] sm:$0xff]
    %v98 = vld [vmem:[#allocation3 + $0x40] sm:$0xff]
    %v99 = vld [vmem:[#allocation3 + $0x48] sm:$0xff]
    %v100 = vld [vmem:[#allocation3 + $0x50] sm:$0xff]
    %v101 = vld [vmem:[#allocation3 + $0x58] sm:$0xff]
    %v102 = vld [vmem:[#allocation3 + $0x60] sm:$0xff]
    %v103 = vld [vmem:[#allocation3 + $0x68] sm:$0xff]
    %v104 = vld [vmem:[#allocation3 + $0x70] sm:$0xff]
    %v105 = vld [vmem:[#allocation3 + $0x78] sm:$0xff]
    %v106 = vld [vmem:[#allocation3 + $0x80] sm:$0xff]
    %v107 = vld [vmem:[#allocation3 + $0x88] sm:$0xff]
    %v108 = vld [vmem:[#allocation3 + $0x90] sm:$0xff]
    %v109 = vld [vmem:[#allocation3 + $0x98] sm:$0xff]
    %v110 = vld [vmem:[#allocation3 + $0xa0] sm:$0xff]
    %v111 = vld [vmem:[#allocation3 + $0xa8] sm:$0xff]
    %v112 = vld [vmem:[#allocation3 + $0xb0] sm:$0xff]
    %v113 = vld [vmem:[#allocation3 + $0xb8] sm:$0xff]
    %v114 = vld [vmem:[#allocation3 + $0xc0] sm:$0xff]
    %v115 = vld [vmem:[#allocation3 + $0xc8] sm:$0xff]
    %v116 = vld [vmem:[#allocation3 + $0xd0] sm:$0xff]
    %v117 = vld [vmem:[#allocation3 + $0xd8] sm:$0xff]
    %v118 = vld [vmem:[#allocation3 + $0xe0] sm:$0xff]
    %v119 = vld [vmem:[#allocation3 + $0xe8] sm:$0xff]
    %v120 = vld [vmem:[#allocation3 + $0xf0] sm:$0xff]
    %v121 = vld [vmem:[#allocation3 + $0xf8] sm:$0xff]
    %v122 = vld [vmem:[%s2] sm:$0xf]
    %v124 = vlaneseq
    %v125 = vshrl.u32 %v124, 7
    %v126 = vsub.s32 0, %v125
    %v127 = vrot.slane %v122, %v126
    %v128 = vlaneseq
    %v129 = vshrl.u32 %v128, 7
    %v130 = vsub.s32 1, %v129
    %v131 = vrot.slane %v122, %v130
    %v132 = vlaneseq
    %v133 = vshrl.u32 %v132, 7
    %v134 = vsub.s32 2, %v133
    %v135 = vrot.slane %v122, %v134
    %v136 = vlaneseq
    %v137 = vshrl.u32 %v136, 7
    %v138 = vsub.s32 3, %v137
    %v139 = vrot.slane %v122, %v138
    %v148 = vcombine.low %v86, %v87
    %v149 = vcombine.low %v88, %v89
    %v151 = vunpack.c.l.s4 1966171168
    %v152 = vunpack.c.0.s8 %v151
    %v153 = vlaneseq
    %v154 = vshrl.u32 %v153, 7
    %v155 = vsub.s32 %v152, %v154
    %v156 = vrot.slane %v148, %v155
    %v158 = vunpack.c.l.s4 1966171168
    %v159 = vunpack.c.0.s8 %v158
    %v160 = vlaneseq
    %v161 = vshrl.u32 %v160, 7
    %v162 = vsub.s32 %v159, %v161
    %v163 = vrot.slane %v149, %v162
    %v164 = vcombine.low %v156, %v163
    %v166 = vunpack.c.l.s4 1966171168
    %v167 = vunpack.c.0.s8 %v166
    %v168 = vlaneseq
    %v169 = vshrl.u32 %v168, 7
    %v170 = vsub.s32 %v167, %v169
    %v171 = vrot.slane %v164, %v170
    %v205 = vunpack.c.l.b16 %v90
    %v206 = vunpack.c.h.b16 %v90
    %v207 = vunpack.c.l.b16 %v91
    %v208 = vunpack.c.h.b16 %v91
    %v209 = vunpack.c.l.b16 %v92
    %v210 = vunpack.c.h.b16 %v92
    %v211 = vunpack.c.l.b16 %v93
    %v212 = vunpack.c.h.b16 %v93
    %v213 = vunpack.c.l.b16 %v94
    %v214 = vunpack.c.h.b16 %v94
    %v215 = vunpack.c.l.b16 %v95
    %v216 = vunpack.c.h.b16 %v95
    %v217 = vunpack.c.l.b16 %v96
    %v218 = vunpack.c.h.b16 %v96
    %v219 = vunpack.c.l.b16 %v97
    %v220 = vunpack.c.h.b16 %v97
    %v221 = vunpack.c.l.b16 %v98
    %v222 = vunpack.c.h.b16 %v98
    %v223 = vunpack.c.l.b16 %v99
    %v224 = vunpack.c.h.b16 %v99
    %v225 = vunpack.c.l.b16 %v100
    %v226 = vunpack.c.h.b16 %v100
    %v227 = vunpack.c.l.b16 %v101
    %v228 = vunpack.c.h.b16 %v101
    %v229 = vunpack.c.l.b16 %v102
    %v230 = vunpack.c.h.b16 %v102
    %v231 = vunpack.c.l.b16 %v103
    %v232 = vunpack.c.h.b16 %v103
    %v233 = vunpack.c.l.b16 %v104
    %v234 = vunpack.c.h.b16 %v104
    %v235 = vunpack.c.l.b16 %v105
    %v236 = vunpack.c.h.b16 %v105
    %v237 = vunpack.c.l.b16 %v106
    %v238 = vunpack.c.h.b16 %v106
    %v239 = vunpack.c.l.b16 %v107
    %v240 = vunpack.c.h.b16 %v107
    %v241 = vunpack.c.l.b16 %v108
    %v242 = vunpack.c.h.b16 %v108
    %v243 = vunpack.c.l.b16 %v109
    %v244 = vunpack.c.h.b16 %v109
    %v245 = vunpack.c.l.b16 %v110
    %v246 = vunpack.c.h.b16 %v110
    %v247 = vunpack.c.l.b16 %v111
    %v248 = vunpack.c.h.b16 %v111
    %v249 = vunpack.c.l.b16 %v112
    %v250 = vunpack.c.h.b16 %v112
    %v251 = vunpack.c.l.b16 %v113
    %v252 = vunpack.c.h.b16 %v113
    %v253 = vunpack.c.l.b16 %v114
    %v254 = vunpack.c.h.b16 %v114
    %v255 = vunpack.c.l.b16 %v115
    %v256 = vunpack.c.h.b16 %v115
    %v257 = vunpack.c.l.b16 %v116
    %v258 = vunpack.c.h.b16 %v116
    %v259 = vunpack.c.l.b16 %v117
    %v260 = vunpack.c.h.b16 %v117
    %v261 = vunpack.c.l.b16 %v118
    %v262 = vunpack.c.h.b16 %v118
    %v263 = vunpack.c.l.b16 %v119
    %v264 = vunpack.c.h.b16 %v119
    %v265 = vunpack.c.l.b16 %v120
    %v266 = vunpack.c.h.b16 %v120
    %v267 = vunpack.c.l.b16 %v121
    %v268 = vunpack.c.h.b16 %v121
    %v269 = vpack.c.b16 %v209, %v205
    %v270 = vpack.c.b16 %v210, %v206
    %v271 = vpack.c.b16 %v211, %v207
    %v272 = vpack.c.b16 %v212, %v208
    %v273 = vpack.c.b16 %v217, %v213
    %v274 = vpack.c.b16 %v218, %v214
    %v275 = vpack.c.b16 %v219, %v215
    %v276 = vpack.c.b16 %v220, %v216
    %v277 = vpack.c.b16 %v225, %v221
    %v278 = vpack.c.b16 %v226, %v222
    %v279 = vpack.c.b16 %v227, %v223
    %v280 = vpack.c.b16 %v228, %v224
    %v281 = vpack.c.b16 %v233, %v229
    %v282 = vpack.c.b16 %v234, %v230
    %v283 = vpack.c.b16 %v235, %v231
    %v284 = vpack.c.b16 %v236, %v232
    %v285 = vpack.c.b16 %v241, %v237
    %v286 = vpack.c.b16 %v242, %v238
    %v287 = vpack.c.b16 %v243, %v239
    %v288 = vpack.c.b16 %v244, %v240
    %v289 = vpack.c.b16 %v249, %v245
    %v290 = vpack.c.b16 %v250, %v246
    %v291 = vpack.c.b16 %v251, %v247
    %v292 = vpack.c.b16 %v252, %v248
    %v293 = vpack.c.b16 %v257, %v253
    %v294 = vpack.c.b16 %v258, %v254
    %v295 = vpack.c.b16 %v259, %v255
    %v296 = vpack.c.b16 %v260, %v256
    %v297 = vpack.c.b16 %v265, %v261
    %v298 = vpack.c.b16 %v266, %v262
    %v299 = vpack.c.b16 %v267, %v263
    %v300 = vpack.c.b16 %v268, %v264
    %333 = vmatprep.subr.bf16.mxu0 %v298
    %334 = vmatpush1.bf16.msra.mxu0 %v297
    %335 = vmatprep.subr.bf16.mxu0 %v294
    %336 = vmatpush1.bf16.msra.mxu0 %v293
    %337 = vmatprep.subr.bf16.mxu0 %v290
    %338 = vmatpush1.bf16.msra.mxu0 %v289
    %339 = vmatprep.subr.bf16.mxu0 %v286
    %340 = vmatpush1.bf16.msra.mxu0 %v285
    %341 = vmatprep.subr.bf16.mxu0 %v282
    %342 = vmatpush1.bf16.msra.mxu0 %v281
    %343 = vmatprep.subr.bf16.mxu0 %v278
    %344 = vmatpush1.bf16.msra.mxu0 %v277
    %345 = vmatprep.subr.bf16.mxu0 %v274
    %346 = vmatpush1.bf16.msra.mxu0 %v273
    %347 = vmatprep.subr.bf16.mxu0 %v270
    %348 = vmatpush1.bf16.msra.mxu0 %v269
    %349 = vmatprep.subr.bf16.mxu0 0
    %350 = vmatpush2.bf16.msra.mxu0 0
    %351 = vmatprep.subr.bf16.mxu0 0
    %352 = vmatpush2.bf16.msra.mxu0 0
    %353 = vmatprep.subr.bf16.mxu0 0
    %354 = vmatpush2.bf16.msra.mxu0 0
    %355 = vmatprep.subr.bf16.mxu0 0
    %356 = vmatpush2.bf16.msra.mxu0 0
    %357 = vmatprep.subr.bf16.mxu0 0
    %358 = vmatpush2.bf16.msra.mxu0 0
    %359 = vmatprep.subr.bf16.mxu0 0
    %360 = vmatpush2.bf16.msra.mxu0 0
    %361 = vmatprep.subr.bf16.mxu0 0
    %362 = vmatpush2.bf16.msra.mxu0 0
    %363 = vmatprep.subr.bf16.mxu0 0
    %364 = vmatpush2.bf16.msra.mxu0 0
    %365 = vmatprep.mubr.bf16.mxu0 0
    %366 = vmatmul.mubr.bf16.gmra.mxu0 %v171
    %v367 = vpop.f32.mrf.mxu0
    %v368 = vadd.f32 %v127, %v367
    %v369 = vpop.f32.mrf.mxu0
    %v370 = vadd.f32 %v131, %v369
    %v371 = vpop.f32.mrf.mxu0
    %v372 = vpop.f32.mrf.mxu0
    %373 = vdwg.mxu0
    %374 = vmatprep.subr.bf16.mxu0 %v300
    %375 = vmatpush1.bf16.msra.mxu0 %v299
    %376 = vmatprep.subr.bf16.mxu0 %v296
    %377 = vmatpush1.bf16.msra.mxu0 %v295
    %378 = vmatprep.subr.bf16.mxu0 %v292
    %379 = vmatpush1.bf16.msra.mxu0 %v291
    %380 = vmatprep.subr.bf16.mxu0 %v288
    %381 = vmatpush1.bf16.msra.mxu0 %v287
    %382 = vmatprep.subr.bf16.mxu0 %v284
    %383 = vmatpush1.bf16.msra.mxu0 %v283
    %384 = vmatprep.subr.bf16.mxu0 %v280
    %385 = vmatpush1.bf16.msra.mxu0 %v279
    %386 = vmatprep.subr.bf16.mxu0 %v276
    %387 = vmatpush1.bf16.msra.mxu0 %v275
    %388 = vmatprep.subr.bf16.mxu0 %v272
    %389 = vmatpush1.bf16.msra.mxu0 %v271
    %390 = vmatprep.subr.bf16.mxu0 0
    %391 = vmatpush2.bf16.msra.mxu0 0
    %392 = vmatprep.subr.bf16.mxu0 0
    %393 = vmatpush2.bf16.msra.mxu0 0
    %394 = vmatprep.subr.bf16.mxu0 0
    %395 = vmatpush2.bf16.msra.mxu0 0
    %396 = vmatprep.subr.bf16.mxu0 0
    %397 = vmatpush2.bf16.msra.mxu0 0
    %398 = vmatprep.subr.bf16.mxu0 0
    %399 = vmatpush2.bf16.msra.mxu0 0
    %400 = vmatprep.subr.bf16.mxu0 0
    %401 = vmatpush2.bf16.msra.mxu0 0
    %402 = vmatprep.subr.bf16.mxu0 0
    %403 = vmatpush2.bf16.msra.mxu0 0
    %404 = vmatprep.subr.bf16.mxu0 0
    %405 = vmatpush2.bf16.msra.mxu0 0
    %406 = vmatprep.mubr.bf16.mxu0 0
    %407 = vmatmul.mubr.bf16.gmra.mxu0 %v171
    %v408 = vpop.f32.mrf.mxu0
    %v409 = vadd.f32 %v135, %v408
    %v410 = vpop.f32.mrf.mxu0
    %v411 = vadd.f32 %v139, %v410
    %v412 = vpop.f32.mrf.mxu0
    %v413 = vpop.f32.mrf.mxu0
    %414 = vdwg.mxu0
    %v415 = vmax.f32 %v368, 0.0
    %v416 = vmax.f32 %v370, 0.0
    %v417 = vmax.f32 %v409, 0.0
    %v418 = vmax.f32 %v411, 0.0
    %v419 = vld [vmem:[#allocation7] sm:$0xff]
    %v420 = vld [vmem:[#allocation7 + $0x8] sm:$0xf]
    %v421 = vld [vmem:[#allocation7 + $0xc] sm:$0xff]
    %v422 = vld [vmem:[#allocation7 + $0x14] sm:$0xf]
    %v423 = vld [vmem:[#allocation7 + $0x18] sm:$0xff]
    %v424 = vld [vmem:[#allocation7 + $0x20] sm:$0xf]
    %v425 = vld [vmem:[#allocation7 + $0x24] sm:$0xff]
    %v426 = vld [vmem:[#allocation7 + $0x2c] sm:$0xf]
    %v427 = vld [vmem:[#allocation7 + $0x30] sm:$0xff]
    %v428 = vld [vmem:[#allocation7 + $0x38] sm:$0xf]
    %v429 = vld [vmem:[#allocation7 + $0x3c] sm:$0xff]
    %v430 = vld [vmem:[#allocation7 + $0x44] sm:$0xf]
    %v431 = vld [vmem:[#allocation7 + $0x48] sm:$0xff]
    %v432 = vld [vmem:[#allocation7 + $0x50] sm:$0xf]
    %v433 = vld [vmem:[#allocation7 + $0x54] sm:$0xff]
    %v434 = vld [vmem:[#allocation7 + $0x5c] sm:$0xf]
    %v435 = vld [vmem:[#allocation7 + $0x60] sm:$0xff]
    %v436 = vld [vmem:[#allocation7 + $0x68] sm:$0xf]
    %v437 = vld [vmem:[#allocation7 + $0x6c] sm:$0xff]
    %v438 = vld [vmem:[#allocation7 + $0x74] sm:$0xf]
    %v439 = vld [vmem:[#allocation7 + $0x78] sm:$0xff]
    %v440 = vld [vmem:[#allocation7 + $0x80] sm:$0xf]
    %v441 = vld [vmem:[#allocation7 + $0x84] sm:$0xff]
    %v442 = vld [vmem:[#allocation7 + $0x8c] sm:$0xf]
    %v443 = vld [vmem:[#allocation7 + $0x90] sm:$0xff]
    %v444 = vld [vmem:[#allocation7 + $0x98] sm:$0xf]
    %v445 = vld [vmem:[#allocation7 + $0x9c] sm:$0xff]
    %v446 = vld [vmem:[#allocation7 + $0xa4] sm:$0xf]
    %v447 = vld [vmem:[#allocation7 + $0xa8] sm:$0xff]
    %v448 = vld [vmem:[#allocation7 + $0xb0] sm:$0xf]
    %v449 = vld [vmem:[#allocation7 + $0xb4] sm:$0xff]
    %v450 = vld [vmem:[#allocation7 + $0xbc] sm:$0xf]
    %v483 = vunpack.c.l.b16 %v419
    %v484 = vunpack.c.h.b16 %v419
    %v485 = vunpack.c.l.b16 %v420
    %v486 = vunpack.c.l.b16 %v421
    %v487 = vunpack.c.h.b16 %v421
    %v488 = vunpack.c.l.b16 %v422
    %v489 = vunpack.c.l.b16 %v423
    %v490 = vunpack.c.h.b16 %v423
    %v491 = vunpack.c.l.b16 %v424
    %v492 = vunpack.c.l.b16 %v425
    %v493 = vunpack.c.h.b16 %v425
    %v494 = vunpack.c.l.b16 %v426
    %v495 = vunpack.c.l.b16 %v427
    %v496 = vunpack.c.h.b16 %v427
    %v497 = vunpack.c.l.b16 %v428
    %v498 = vunpack.c.l.b16 %v429
    %v499 = vunpack.c.h.b16 %v429
    %v500 = vunpack.c.l.b16 %v430
    %v501 = vunpack.c.l.b16 %v431
    %v502 = vunpack.c.h.b16 %v431
    %v503 = vunpack.c.l.b16 %v432
    %v504 = vunpack.c.l.b16 %v433
    %v505 = vunpack.c.h.b16 %v433
    %v506 = vunpack.c.l.b16 %v434
    %v507 = vunpack.c.l.b16 %v435
    %v508 = vunpack.c.h.b16 %v435
    %v509 = vunpack.c.l.b16 %v436
    %v510 = vunpack.c.l.b16 %v437
    %v511 = vunpack.c.h.b16 %v437
    %v512 = vunpack.c.l.b16 %v438
    %v513 = vunpack.c.l.b16 %v439
    %v514 = vunpack.c.h.b16 %v439
    %v515 = vunpack.c.l.b16 %v440
    %v516 = vunpack.c.l.b16 %v441
    %v517 = vunpack.c.h.b16 %v441
    %v518 = vunpack.c.l.b16 %v442
    %v519 = vunpack.c.l.b16 %v443
    %v520 = vunpack.c.h.b16 %v443
    %v521 = vunpack.c.l.b16 %v444
    %v522 = vunpack.c.l.b16 %v445
    %v523 = vunpack.c.h.b16 %v445
    %v524 = vunpack.c.l.b16 %v446
    %v525 = vunpack.c.l.b16 %v447
    %v526 = vunpack.c.h.b16 %v447
    %v527 = vunpack.c.l.b16 %v448
    %v528 = vunpack.c.l.b16 %v449
    %v529 = vunpack.c.h.b16 %v449
    %v530 = vunpack.c.l.b16 %v450
    %v531 = vpack.c.b16 %v486, %v483
    %v532 = vpack.c.b16 %v487, %v484
    %v533 = vpack.c.b16 %v488, %v485
    %v534 = vpack.c.b16 %v492, %v489
    %v535 = vpack.c.b16 %v493, %v490
    %v536 = vpack.c.b16 %v494, %v491
    %v537 = vpack.c.b16 %v498, %v495
    %v538 = vpack.c.b16 %v499, %v496
    %v539 = vpack.c.b16 %v500, %v497
    %v540 = vpack.c.b16 %v504, %v501
    %v541 = vpack.c.b16 %v505, %v502
    %v542 = vpack.c.b16 %v506, %v503
    %v543 = vpack.c.b16 %v510, %v507
    %v544 = vpack.c.b16 %v511, %v508
    %v545 = vpack.c.b16 %v512, %v509
    %v546 = vpack.c.b16 %v516, %v513
    %v547 = vpack.c.b16 %v517, %v514
    %v548 = vpack.c.b16 %v518, %v515
    %v549 = vpack.c.b16 %v522, %v519
    %v550 = vpack.c.b16 %v523, %v520
    %v551 = vpack.c.b16 %v524, %v521
    %v552 = vpack.c.b16 %v528, %v525
    %v553 = vpack.c.b16 %v529, %v526
    %v554 = vpack.c.b16 %v530, %v527
    %579 = vmatprep.subr.bf16.mxu0 %v553
    %580 = vmatpush1.bf16.msra.mxu0 %v552
    %581 = vmatprep.subr.bf16.mxu0 %v550
    %582 = vmatpush1.bf16.msra.mxu0 %v549
    %583 = vmatprep.subr.bf16.mxu0 %v547
    %584 = vmatpush1.bf16.msra.mxu0 %v546
    %585 = vmatprep.subr.bf16.mxu0 %v544
    %586 = vmatpush1.bf16.msra.mxu0 %v543
    %587 = vmatprep.subr.bf16.mxu0 %v541
    %588 = vmatpush1.bf16.msra.mxu0 %v540
    %589 = vmatprep.subr.bf16.mxu0 %v538
    %590 = vmatpush1.bf16.msra.mxu0 %v537
    %591 = vmatprep.subr.bf16.mxu0 %v535
    %592 = vmatpush1.bf16.msra.mxu0 %v534
    %593 = vmatprep.subr.bf16.mxu0 %v532
    %594 = vmatpush1.bf16.msra.mxu0 %v531
    %595 = vmatprep.subr.bf16.mxu0 0
    %596 = vmatpush2.bf16.msra.mxu0 0
    %597 = vmatprep.subr.bf16.mxu0 0
    %598 = vmatpush2.bf16.msra.mxu0 0
    %599 = vmatprep.subr.bf16.mxu0 0
    %600 = vmatpush2.bf16.msra.mxu0 0
    %601 = vmatprep.subr.bf16.mxu0 0
    %602 = vmatpush2.bf16.msra.mxu0 0
    %603 = vmatprep.subr.bf16.mxu0 0
    %604 = vmatpush2.bf16.msra.mxu0 0
    %605 = vmatprep.subr.bf16.mxu0 0
    %606 = vmatpush2.bf16.msra.mxu0 0
    %607 = vmatprep.subr.bf16.mxu0 0
    %608 = vmatpush2.bf16.msra.mxu0 0
    %609 = vmatprep.subr.bf16.mxu0 0
    %610 = vmatpush2.bf16.msra.mxu0 0
    %611 = vmatprep.mubr.bf16.mxu0 0
    %612 = vmatmul.mubr.bf16.gmra.mxu0 %v171
    %v613 = vpop.f32.mrf.mxu0
    %v614 = vadd.f32 0.0, %v613
    %v615 = vpop.f32.mrf.mxu0
    %v616 = vadd.f32 0.0, %v615
    %v617 = vpop.f32.mrf.mxu0
    %v618 = vpop.f32.mrf.mxu0
    %619 = vdwg.mxu0
    %620 = vmatprep.subr.bf16.mxu0 0
    %621 = vmatpush1.bf16.msra.mxu0 %v554
    %622 = vmatprep.subr.bf16.mxu0 0
    %623 = vmatpush1.bf16.msra.mxu0 %v551
    %624 = vmatprep.subr.bf16.mxu0 0
    %625 = vmatpush1.bf16.msra.mxu0 %v548
    %626 = vmatprep.subr.bf16.mxu0 0
    %627 = vmatpush1.bf16.msra.mxu0 %v545
    %628 = vmatprep.subr.bf16.mxu0 0
    %629 = vmatpush1.bf16.msra.mxu0 %v542
    %630 = vmatprep.subr.bf16.mxu0 0
    %631 = vmatpush1.bf16.msra.mxu0 %v539
    %632 = vmatprep.subr.bf16.mxu0 0
    %633 = vmatpush1.bf16.msra.mxu0 %v536
    %634 = vmatprep.subr.bf16.mxu0 0
    %635 = vmatpush1.bf16.msra.mxu0 %v533
    %636 = vmatprep.subr.bf16.mxu0 0
    %637 = vmatpush2.bf16.msra.mxu0 0
    %638 = vmatprep.subr.bf16.mxu0 0
    %639 = vmatpush2.bf16.msra.mxu0 0
    %640 = vmatprep.subr.bf16.mxu0 0
    %641 = vmatpush2.bf16.msra.mxu0 0
    %642 = vmatprep.subr.bf16.mxu0 0
    %643 = vmatpush2.bf16.msra.mxu0 0
    %644 = vmatprep.subr.bf16.mxu0 0
    %645 = vmatpush2.bf16.msra.mxu0 0
    %646 = vmatprep.subr.bf16.mxu0 0
    %647 = vmatpush2.bf16.msra.mxu0 0
    %648 = vmatprep.subr.bf16.mxu0 0
    %649 = vmatpush2.bf16.msra.mxu0 0
    %650 = vmatprep.subr.bf16.mxu0 0
    %651 = vmatpush2.bf16.msra.mxu0 0
    %652 = vmatprep.mubr.bf16.mxu0 0
    %653 = vmatmul.mubr.bf16.gmra.mxu0 %v171
    %v654 = vpop.f32.mrf.mxu0
    %v655 = vadd.f32 0.0, %v654
    %v656 = vpop.f32.mrf.mxu0
    %v657 = vpop.f32.mrf.mxu0
    %v658 = vpop.f32.mrf.mxu0
    %659 = vdwg.mxu0
    %v660 = vpack.c.bf16 %v415, %v415
    %v661 = vpack.c.bf16 %v416, %v416
    %v662 = vpack.c.bf16 %v417, %v417
    %v663 = vpack.c.bf16 %v418, %v418
    %v664 = vld [vmem:[#allocation5] sm:$0xff]
    %v665 = vld [vmem:[#allocation5 + $0x8] sm:$0xf]
    %v666 = vld [vmem:[#allocation5 + $0xc] sm:$0xff]
    %v667 = vld [vmem:[#allocation5 + $0x14] sm:$0xf]
    %v668 = vld [vmem:[#allocation5 + $0x18] sm:$0xff]
    %v669 = vld [vmem:[#allocation5 + $0x20] sm:$0xf]
    %v670 = vld [vmem:[#allocation5 + $0x24] sm:$0xff]
    %v671 = vld [vmem:[#allocation5 + $0x2c] sm:$0xf]
    %v672 = vld [vmem:[#allocation5 + $0x30] sm:$0xff]
    %v673 = vld [vmem:[#allocation5 + $0x38] sm:$0xf]
    %v674 = vld [vmem:[#allocation5 + $0x3c] sm:$0xff]
    %v675 = vld [vmem:[#allocation5 + $0x44] sm:$0xf]
    %v676 = vld [vmem:[#allocation5 + $0x48] sm:$0xff]
    %v677 = vld [vmem:[#allocation5 + $0x50] sm:$0xf]
    %v678 = vld [vmem:[#allocation5 + $0x54] sm:$0xff]
    %v679 = vld [vmem:[#allocation5 + $0x5c] sm:$0xf]
    %v680 = vld [vmem:[#allocation5 + $0x60] sm:$0xff]
    %v681 = vld [vmem:[#allocation5 + $0x68] sm:$0xf]
    %v682 = vld [vmem:[#allocation5 + $0x6c] sm:$0xff]
    %v683 = vld [vmem:[#allocation5 + $0x74] sm:$0xf]
    %v684 = vld [vmem:[#allocation5 + $0x78] sm:$0xff]
    %v685 = vld [vmem:[#allocation5 + $0x80] sm:$0xf]
    %v686 = vld [vmem:[#allocation5 + $0x84] sm:$0xff]
    %v687 = vld [vmem:[#allocation5 + $0x8c] sm:$0xf]
    %v688 = vld [vmem:[#allocation5 + $0x90] sm:$0xff]
    %v689 = vld [vmem:[#allocation5 + $0x98] sm:$0xf]
    %v690 = vld [vmem:[#allocation5 + $0x9c] sm:$0xff]
    %v691 = vld [vmem:[#allocation5 + $0xa4] sm:$0xf]
    %v692 = vld [vmem:[#allocation5 + $0xa8] sm:$0xff]
    %v693 = vld [vmem:[#allocation5 + $0xb0] sm:$0xf]
    %v694 = vld [vmem:[#allocation5 + $0xb4] sm:$0xff]
    %v695 = vld [vmem:[#allocation5 + $0xbc] sm:$0xf]
    %v696 = vld [vmem:[#allocation5 + $0xc0] sm:$0xff]
    %v697 = vld [vmem:[#allocation5 + $0xc8] sm:$0xf]
    %v698 = vld [vmem:[#allocation5 + $0xcc] sm:$0xff]
    %v699 = vld [vmem:[#allocation5 + $0xd4] sm:$0xf]
    %v700 = vld [vmem:[#allocation5 + $0xd8] sm:$0xff]
    %v701 = vld [vmem:[#allocation5 + $0xe0] sm:$0xf]
    %v702 = vld [vmem:[#allocation5 + $0xe4] sm:$0xff]
    %v703 = vld [vmem:[#allocation5 + $0xec] sm:$0xf]
    %v704 = vld [vmem:[#allocation5 + $0xf0] sm:$0xff]
    %v705 = vld [vmem:[#allocation5 + $0xf8] sm:$0xf]
    %v706 = vld [vmem:[#allocation5 + $0xfc] sm:$0xff]
    %v707 = vld [vmem:[#allocation5 + $0x104] sm:$0xf]
    %v708 = vld [vmem:[#allocation5 + $0x108] sm:$0xff]
    %v709 = vld [vmem:[#allocation5 + $0x110] sm:$0xf]
    %v710 = vld [vmem:[#allocation5 + $0x114] sm:$0xff]
    %v711 = vld [vmem:[#allocation5 + $0x11c] sm:$0xf]
    %v712 = vld [vmem:[#allocation5 + $0x120] sm:$0xff]
    %v713 = vld [vmem:[#allocation5 + $0x128] sm:$0xf]
    %v714 = vld [vmem:[#allocation5 + $0x12c] sm:$0xff]
    %v715 = vld [vmem:[#allocation5 + $0x134] sm:$0xf]
    %v716 = vld [vmem:[#allocation5 + $0x138] sm:$0xff]
    %v717 = vld [vmem:[#allocation5 + $0x140] sm:$0xf]
    %v718 = vld [vmem:[#allocation5 + $0x144] sm:$0xff]
    %v719 = vld [vmem:[#allocation5 + $0x14c] sm:$0xf]
    %v720 = vld [vmem:[#allocation5 + $0x150] sm:$0xff]
    %v721 = vld [vmem:[#allocation5 + $0x158] sm:$0xf]
    %v722 = vld [vmem:[#allocation5 + $0x15c] sm:$0xff]
    %v723 = vld [vmem:[#allocation5 + $0x164] sm:$0xf]
    %v724 = vld [vmem:[#allocation5 + $0x168] sm:$0xff]
    %v725 = vld [vmem:[#allocation5 + $0x170] sm:$0xf]
    %v726 = vld [vmem:[#allocation5 + $0x174] sm:$0xff]
    %v727 = vld [vmem:[#allocation5 + $0x17c] sm:$0xf]
    %v728 = vld [vmem:[#allocation5 + $0x180] sm:$0xff]
    %v729 = vld [vmem:[#allocation5 + $0x188] sm:$0xf]
    %v730 = vld [vmem:[#allocation5 + $0x18c] sm:$0xff]
    %v731 = vld [vmem:[#allocation5 + $0x194] sm:$0xf]
    %v732 = vld [vmem:[#allocation5 + $0x198] sm:$0xff]
    %v733 = vld [vmem:[#allocation5 + $0x1a0] sm:$0xf]
    %v734 = vld [vmem:[#allocation5 + $0x1a4] sm:$0xff]
    %v735 = vld [vmem:[#allocation5 + $0x1ac] sm:$0xf]
    %v736 = vld [vmem:[#allocation5 + $0x1b0] sm:$0xff]
    %v737 = vld [vmem:[#allocation5 + $0x1b8] sm:$0xf]
    %v738 = vld [vmem:[#allocation5 + $0x1bc] sm:$0xff]
    %v739 = vld [vmem:[#allocation5 + $0x1c4] sm:$0xf]
    %v740 = vld [vmem:[#allocation5 + $0x1c8] sm:$0xff]
    %v741 = vld [vmem:[#allocation5 + $0x1d0] sm:$0xf]
    %v742 = vld [vmem:[#allocation5 + $0x1d4] sm:$0xff]
    %v743 = vld [vmem:[#allocation5 + $0x1dc] sm:$0xf]
    %v744 = vld [vmem:[#allocation5 + $0x1e0] sm:$0xff]
    %v745 = vld [vmem:[#allocation5 + $0x1e8] sm:$0xf]
    %v746 = vld [vmem:[#allocation5 + $0x1ec] sm:$0xff]
    %v747 = vld [vmem:[#allocation5 + $0x1f4] sm:$0xf]
    %v748 = vld [vmem:[#allocation5 + $0x1f8] sm:$0xff]
    %v749 = vld [vmem:[#allocation5 + $0x200] sm:$0xf]
    %v750 = vld [vmem:[#allocation5 + $0x204] sm:$0xff]
    %v751 = vld [vmem:[#allocation5 + $0x20c] sm:$0xf]
    %v752 = vld [vmem:[#allocation5 + $0x210] sm:$0xff]
    %v753 = vld [vmem:[#allocation5 + $0x218] sm:$0xf]
    %v754 = vld [vmem:[#allocation5 + $0x21c] sm:$0xff]
    %v755 = vld [vmem:[#allocation5 + $0x224] sm:$0xf]
    %v756 = vld [vmem:[#allocation5 + $0x228] sm:$0xff]
    %v757 = vld [vmem:[#allocation5 + $0x230] sm:$0xf]
    %v758 = vld [vmem:[#allocation5 + $0x234] sm:$0xff]
    %v759 = vld [vmem:[#allocation5 + $0x23c] sm:$0xf]
    %v760 = vld [vmem:[#allocation5 + $0x240] sm:$0xff]
    %v761 = vld [vmem:[#allocation5 + $0x248] sm:$0xf]
    %v762 = vld [vmem:[#allocation5 + $0x24c] sm:$0xff]
    %v763 = vld [vmem:[#allocation5 + $0x254] sm:$0xf]
    %v764 = vld [vmem:[#allocation5 + $0x258] sm:$0xff]
    %v765 = vld [vmem:[#allocation5 + $0x260] sm:$0xf]
    %v766 = vld [vmem:[#allocation5 + $0x264] sm:$0xff]
    %v767 = vld [vmem:[#allocation5 + $0x26c] sm:$0xf]
    %v768 = vld [vmem:[#allocation5 + $0x270] sm:$0xff]
    %v769 = vld [vmem:[#allocation5 + $0x278] sm:$0xf]
    %v770 = vld [vmem:[#allocation5 + $0x27c] sm:$0xff]
    %v771 = vld [vmem:[#allocation5 + $0x284] sm:$0xf]
    %v772 = vld [vmem:[#allocation5 + $0x288] sm:$0xff]
    %v773 = vld [vmem:[#allocation5 + $0x290] sm:$0xf]
    %v774 = vld [vmem:[#allocation5 + $0x294] sm:$0xff]
    %v775 = vld [vmem:[#allocation5 + $0x29c] sm:$0xf]
    %v776 = vld [vmem:[#allocation5 + $0x2a0] sm:$0xff]
    %v777 = vld [vmem:[#allocation5 + $0x2a8] sm:$0xf]
    %v778 = vld [vmem:[#allocation5 + $0x2ac] sm:$0xff]
    %v779 = vld [vmem:[#allocation5 + $0x2b4] sm:$0xf]
    %v780 = vld [vmem:[#allocation5 + $0x2b8] sm:$0xff]
    %v781 = vld [vmem:[#allocation5 + $0x2c0] sm:$0xf]
    %v782 = vld [vmem:[#allocation5 + $0x2c4] sm:$0xff]
    %v783 = vld [vmem:[#allocation5 + $0x2cc] sm:$0xf]
    %v784 = vld [vmem:[#allocation5 + $0x2d0] sm:$0xff]
    %v785 = vld [vmem:[#allocation5 + $0x2d8] sm:$0xf]
    %v786 = vld [vmem:[#allocation5 + $0x2dc] sm:$0xff]
    %v787 = vld [vmem:[#allocation5 + $0x2e4] sm:$0xf]
    %v788 = vld [vmem:[#allocation5 + $0x2e8] sm:$0xff]
    %v789 = vld [vmem:[#allocation5 + $0x2f0] sm:$0xf]
    %v790 = vld [vmem:[#allocation5 + $0x2f4] sm:$0xff]
    %v791 = vld [vmem:[#allocation5 + $0x2fc] sm:$0xf]
    %v920 = vunpack.c.l.b16 %v664
    %v921 = vunpack.c.h.b16 %v664
    %v922 = vunpack.c.l.b16 %v665
    %v923 = vunpack.c.l.b16 %v666
    %v924 = vunpack.c.h.b16 %v666
    %v925 = vunpack.c.l.b16 %v667
    %v926 = vunpack.c.l.b16 %v668
    %v927 = vunpack.c.h.b16 %v668
    %v928 = vunpack.c.l.b16 %v669
    %v929 = vunpack.c.l.b16 %v670
    %v930 = vunpack.c.h.b16 %v670
    %v931 = vunpack.c.l.b16 %v671
    %v932 = vunpack.c.l.b16 %v672
    %v933 = vunpack.c.h.b16 %v672
    %v934 = vunpack.c.l.b16 %v673
    %v935 = vunpack.c.l.b16 %v674
    %v936 = vunpack.c.h.b16 %v674
    %v937 = vunpack.c.l.b16 %v675
    %v938 = vunpack.c.l.b16 %v676
    %v939 = vunpack.c.h.b16 %v676
    %v940 = vunpack.c.l.b16 %v677
    %v941 = vunpack.c.l.b16 %v678
    %v942 = vunpack.c.h.b16 %v678
    %v943 = vunpack.c.l.b16 %v679
    %v944 = vunpack.c.l.b16 %v680
    %v945 = vunpack.c.h.b16 %v680
    %v946 = vunpack.c.l.b16 %v681
    %v947 = vunpack.c.l.b16 %v682
    %v948 = vunpack.c.h.b16 %v682
    %v949 = vunpack.c.l.b16 %v683
    %v950 = vunpack.c.l.b16 %v684
    %v951 = vunpack.c.h.b16 %v684
    %v952 = vunpack.c.l.b16 %v685
    %v953 = vunpack.c.l.b16 %v686
    %v954 = vunpack.c.h.b16 %v686
    %v955 = vunpack.c.l.b16 %v687
    %v956 = vunpack.c.l.b16 %v688
    %v957 = vunpack.c.h.b16 %v688
    %v958 = vunpack.c.l.b16 %v689
    %v959 = vunpack.c.l.b16 %v690
    %v960 = vunpack.c.h.b16 %v690
    %v961 = vunpack.c.l.b16 %v691
    %v962 = vunpack.c.l.b16 %v692
    %v963 = vunpack.c.h.b16 %v692
    %v964 = vunpack.c.l.b16 %v693
    %v965 = vunpack.c.l.b16 %v694
    %v966 = vunpack.c.h.b16 %v694
    %v967 = vunpack.c.l.b16 %v695
    %v968 = vunpack.c.l.b16 %v696
    %v969 = vunpack.c.h.b16 %v696
    %v970 = vunpack.c.l.b16 %v697
    %v971 = vunpack.c.l.b16 %v698
    %v972 = vunpack.c.h.b16 %v698
    %v973 = vunpack.c.l.b16 %v699
    %v974 = vunpack.c.l.b16 %v700
    %v975 = vunpack.c.h.b16 %v700
    %v976 = vunpack.c.l.b16 %v701
    %v977 = vunpack.c.l.b16 %v702
    %v978 = vunpack.c.h.b16 %v702
    %v979 = vunpack.c.l.b16 %v703
    %v980 = vunpack.c.l.b16 %v704
    %v981 = vunpack.c.h.b16 %v704
    %v982 = vunpack.c.l.b16 %v705
    %v983 = vunpack.c.l.b16 %v706
    %v984 = vunpack.c.h.b16 %v706
    %v985 = vunpack.c.l.b16 %v707
    %v986 = vunpack.c.l.b16 %v708
    %v987 = vunpack.c.h.b16 %v708
    %v988 = vunpack.c.l.b16 %v709
    %v989 = vunpack.c.l.b16 %v710
    %v990 = vunpack.c.h.b16 %v710
    %v991 = vunpack.c.l.b16 %v711
    %v992 = vunpack.c.l.b16 %v712
    %v993 = vunpack.c.h.b16 %v712
    %v994 = vunpack.c.l.b16 %v713
    %v995 = vunpack.c.l.b16 %v714
    %v996 = vunpack.c.h.b16 %v714
    %v997 = vunpack.c.l.b16 %v715
    %v998 = vunpack.c.l.b16 %v716
    %v999 = vunpack.c.h.b16 %v716
    %v1000 = vunpack.c.l.b16 %v717
    %v1001 = vunpack.c.l.b16 %v718
    %v1002 = vunpack.c.h.b16 %v718
    %v1003 = vunpack.c.l.b16 %v719
    %v1004 = vunpack.c.l.b16 %v720
    %v1005 = vunpack.c.h.b16 %v720
    %v1006 = vunpack.c.l.b16 %v721
    %v1007 = vunpack.c.l.b16 %v722
    %v1008 = vunpack.c.h.b16 %v722
    %v1009 = vunpack.c.l.b16 %v723
    %v1010 = vunpack.c.l.b16 %v724
    %v1011 = vunpack.c.h.b16 %v724
    %v1012 = vunpack.c.l.b16 %v725
    %v1013 = vunpack.c.l.b16 %v726
    %v1014 = vunpack.c.h.b16 %v726
    %v1015 = vunpack.c.l.b16 %v727
    %v1016 = vunpack.c.l.b16 %v728
    %v1017 = vunpack.c.h.b16 %v728
    %v1018 = vunpack.c.l.b16 %v729
    %v1019 = vunpack.c.l.b16 %v730
    %v1020 = vunpack.c.h.b16 %v730
    %v1021 = vunpack.c.l.b16 %v731
    %v1022 = vunpack.c.l.b16 %v732
    %v1023 = vunpack.c.h.b16 %v732
    %v1024 = vunpack.c.l.b16 %v733
    %v1025 = vunpack.c.l.b16 %v734
    %v1026 = vunpack.c.h.b16 %v734
    %v1027 = vunpack.c.l.b16 %v735
    %v1028 = vunpack.c.l.b16 %v736
    %v1029 = vunpack.c.h.b16 %v736
    %v1030 = vunpack.c.l.b16 %v737
    %v1031 = vunpack.c.l.b16 %v738
    %v1032 = vunpack.c.h.b16 %v738
    %v1033 = vunpack.c.l.b16 %v739
    %v1034 = vunpack.c.l.b16 %v740
    %v1035 = vunpack.c.h.b16 %v740
    %v1036 = vunpack.c.l.b16 %v741
    %v1037 = vunpack.c.l.b16 %v742
    %v1038 = vunpack.c.h.b16 %v742
    %v1039 = vunpack.c.l.b16 %v743
    %v1040 = vunpack.c.l.b16 %v744
    %v1041 = vunpack.c.h.b16 %v744
    %v1042 = vunpack.c.l.b16 %v745
    %v1043 = vunpack.c.l.b16 %v746
    %v1044 = vunpack.c.h.b16 %v746
    %v1045 = vunpack.c.l.b16 %v747
    %v1046 = vunpack.c.l.b16 %v748
    %v1047 = vunpack.c.h.b16 %v748
    %v1048 = vunpack.c.l.b16 %v749
    %v1049 = vunpack.c.l.b16 %v750
    %v1050 = vunpack.c.h.b16 %v750
    %v1051 = vunpack.c.l.b16 %v751
    %v1052 = vunpack.c.l.b16 %v752
    %v1053 = vunpack.c.h.b16 %v752
    %v1054 = vunpack.c.l.b16 %v753
    %v1055 = vunpack.c.l.b16 %v754
    %v1056 = vunpack.c.h.b16 %v754
    %v1057 = vunpack.c.l.b16 %v755
    %v1058 = vunpack.c.l.b16 %v756
    %v1059 = vunpack.c.h.b16 %v756
    %v1060 = vunpack.c.l.b16 %v757
    %v1061 = vunpack.c.l.b16 %v758
    %v1062 = vunpack.c.h.b16 %v758
    %v1063 = vunpack.c.l.b16 %v759
    %v1064 = vunpack.c.l.b16 %v760
    %v1065 = vunpack.c.h.b16 %v760
    %v1066 = vunpack.c.l.b16 %v761
    %v1067 = vunpack.c.l.b16 %v762
    %v1068 = vunpack.c.h.b16 %v762
    %v1069 = vunpack.c.l.b16 %v763
    %v1070 = vunpack.c.l.b16 %v764
    %v1071 = vunpack.c.h.b16 %v764
    %v1072 = vunpack.c.l.b16 %v765
    %v1073 = vunpack.c.l.b16 %v766
    %v1074 = vunpack.c.h.b16 %v766
    %v1075 = vunpack.c.l.b16 %v767
    %v1076 = vunpack.c.l.b16 %v768
    %v1077 = vunpack.c.h.b16 %v768
    %v1078 = vunpack.c.l.b16 %v769
    %v1079 = vunpack.c.l.b16 %v770
    %v1080 = vunpack.c.h.b16 %v770
    %v1081 = vunpack.c.l.b16 %v771
    %v1082 = vunpack.c.l.b16 %v772
    %v1083 = vunpack.c.h.b16 %v772
    %v1084 = vunpack.c.l.b16 %v773
    %v1085 = vunpack.c.l.b16 %v774
    %v1086 = vunpack.c.h.b16 %v774
    %v1087 = vunpack.c.l.b16 %v775
    %v1088 = vunpack.c.l.b16 %v776
    %v1089 = vunpack.c.h.b16 %v776
    %v1090 = vunpack.c.l.b16 %v777
    %v1091 = vunpack.c.l.b16 %v778
    %v1092 = vunpack.c.h.b16 %v778
    %v1093 = vunpack.c.l.b16 %v779
    %v1094 = vunpack.c.l.b16 %v780
    %v1095 = vunpack.c.h.b16 %v780
    %v1096 = vunpack.c.l.b16 %v781
    %v1097 = vunpack.c.l.b16 %v782
    %v1098 = vunpack.c.h.b16 %v782
    %v1099 = vunpack.c.l.b16 %v783
    %v1100 = vunpack.c.l.b16 %v784
    %v1101 = vunpack.c.h.b16 %v784
    %v1102 = vunpack.c.l.b16 %v785
    %v1103 = vunpack.c.l.b16 %v786
    %v1104 = vunpack.c.h.b16 %v786
    %v1105 = vunpack.c.l.b16 %v787
    %v1106 = vunpack.c.l.b16 %v788
    %v1107 = vunpack.c.h.b16 %v788
    %v1108 = vunpack.c.l.b16 %v789
    %v1109 = vunpack.c.l.b16 %v790
    %v1110 = vunpack.c.h.b16 %v790
    %v1111 = vunpack.c.l.b16 %v791
    %v1112 = vpack.c.b16 %v923, %v920
    %v1113 = vpack.c.b16 %v924, %v921
    %v1114 = vpack.c.b16 %v925, %v922
    %v1115 = vpack.c.b16 %v929, %v926
    %v1116 = vpack.c.b16 %v930, %v927
    %v1117 = vpack.c.b16 %v931, %v928
    %v1118 = vpack.c.b16 %v935, %v932
    %v1119 = vpack.c.b16 %v936, %v933
    %v1120 = vpack.c.b16 %v937, %v934
    %v1121 = vpack.c.b16 %v941, %v938
    %v1122 = vpack.c.b16 %v942, %v939
    %v1123 = vpack.c.b16 %v943, %v940
    %v1124 = vpack.c.b16 %v947, %v944
    %v1125 = vpack.c.b16 %v948, %v945
    %v1126 = vpack.c.b16 %v949, %v946
    %v1127 = vpack.c.b16 %v953, %v950
    %v1128 = vpack.c.b16 %v954, %v951
    %v1129 = vpack.c.b16 %v955, %v952
    %v1130 = vpack.c.b16 %v959, %v956
    %v1131 = vpack.c.b16 %v960, %v957
    %v1132 = vpack.c.b16 %v961, %v958
    %v1133 = vpack.c.b16 %v965, %v962
    %v1134 = vpack.c.b16 %v966, %v963
    %v1135 = vpack.c.b16 %v967, %v964
    %v1136 = vpack.c.b16 %v971, %v968
    %v1137 = vpack.c.b16 %v972, %v969
    %v1138 = vpack.c.b16 %v973, %v970
    %v1139 = vpack.c.b16 %v977, %v974
    %v1140 = vpack.c.b16 %v978, %v975
    %v1141 = vpack.c.b16 %v979, %v976
    %v1142 = vpack.c.b16 %v983, %v980
    %v1143 = vpack.c.b16 %v984, %v981
    %v1144 = vpack.c.b16 %v985, %v982
    %v1145 = vpack.c.b16 %v989, %v986
    %v1146 = vpack.c.b16 %v990, %v987
    %v1147 = vpack.c.b16 %v991, %v988
    %v1148 = vpack.c.b16 %v995, %v992
    %v1149 = vpack.c.b16 %v996, %v993
    %v1150 = vpack.c.b16 %v997, %v994
    %v1151 = vpack.c.b16 %v1001, %v998
    %v1152 = vpack.c.b16 %v1002, %v999
    %v1153 = vpack.c.b16 %v1003, %v1000
    %v1154 = vpack.c.b16 %v1007, %v1004
    %v1155 = vpack.c.b16 %v1008, %v1005
    %v1156 = vpack.c.b16 %v1009, %v1006
    %v1157 = vpack.c.b16 %v1013, %v1010
    %v1158 = vpack.c.b16 %v1014, %v1011
    %v1159 = vpack.c.b16 %v1015, %v1012
    %v1160 = vpack.c.b16 %v1019, %v1016
    %v1161 = vpack.c.b16 %v1020, %v1017
    %v1162 = vpack.c.b16 %v1021, %v1018
    %v1163 = vpack.c.b16 %v1025, %v1022
    %v1164 = vpack.c.b16 %v1026, %v1023
    %v1165 = vpack.c.b16 %v1027, %v1024
    %v1166 = vpack.c.b16 %v1031, %v1028
    %v1167 = vpack.c.b16 %v1032, %v1029
    %v1168 = vpack.c.b16 %v1033, %v1030
    %v1169 = vpack.c.b16 %v1037, %v1034
    %v1170 = vpack.c.b16 %v1038, %v1035
    %v1171 = vpack.c.b16 %v1039, %v1036
    %v1172 = vpack.c.b16 %v1043, %v1040
    %v1173 = vpack.c.b16 %v1044, %v1041
    %v1174 = vpack.c.b16 %v1045, %v1042
    %v1175 = vpack.c.b16 %v1049, %v1046
    %v1176 = vpack.c.b16 %v1050, %v1047
    %v1177 = vpack.c.b16 %v1051, %v1048
    %v1178 = vpack.c.b16 %v1055, %v1052
    %v1179 = vpack.c.b16 %v1056, %v1053
    %v1180 = vpack.c.b16 %v1057, %v1054
    %v1181 = vpack.c.b16 %v1061, %v1058
    %v1182 = vpack.c.b16 %v1062, %v1059
    %v1183 = vpack.c.b16 %v1063, %v1060
    %v1184 = vpack.c.b16 %v1067, %v1064
    %v1185 = vpack.c.b16 %v1068, %v1065
    %v1186 = vpack.c.b16 %v1069, %v1066
    %v1187 = vpack.c.b16 %v1073, %v1070
    %v1188 = vpack.c.b16 %v1074, %v1071
    %v1189 = vpack.c.b16 %v1075, %v1072
    %v1190 = vpack.c.b16 %v1079, %v1076
    %v1191 = vpack.c.b16 %v1080, %v1077
    %v1192 = vpack.c.b16 %v1081, %v1078
    %v1193 = vpack.c.b16 %v1085, %v1082
    %v1194 = vpack.c.b16 %v1086, %v1083
    %v1195 = vpack.c.b16 %v1087, %v1084
    %v1196 = vpack.c.b16 %v1091, %v1088
    %v1197 = vpack.c.b16 %v1092, %v1089
    %v1198 = vpack.c.b16 %v1093, %v1090
    %v1199 = vpack.c.b16 %v1097, %v1094
    %v1200 = vpack.c.b16 %v1098, %v1095
    %v1201 = vpack.c.b16 %v1099, %v1096
    %v1202 = vpack.c.b16 %v1103, %v1100
    %v1203 = vpack.c.b16 %v1104, %v1101
    %v1204 = vpack.c.b16 %v1105, %v1102
    %v1205 = vpack.c.b16 %v1109, %v1106
    %v1206 = vpack.c.b16 %v1110, %v1107
    %v1207 = vpack.c.b16 %v1111, %v1108
    %1304 = vmatprep.subr.bf16.mxu0 %v1134
    %1305 = vmatpush1.bf16.msra.mxu0 %v1133
    %1306 = vmatprep.subr.bf16.mxu0 %v1131
    %1307 = vmatpush1.bf16.msra.mxu0 %v1130
    %1308 = vmatprep.subr.bf16.mxu0 %v1128
    %1309 = vmatpush1.bf16.msra.mxu0 %v1127
    %1310 = vmatprep.subr.bf16.mxu0 %v1125
    %1311 = vmatpush1.bf16.msra.mxu0 %v1124
    %1312 = vmatprep.subr.bf16.mxu0 %v1122
    %1313 = vmatpush1.bf16.msra.mxu0 %v1121
    %1314 = vmatprep.subr.bf16.mxu0 %v1119
    %1315 = vmatpush1.bf16.msra.mxu0 %v1118
    %1316 = vmatprep.subr.bf16.mxu0 %v1116
    %1317 = vmatpush1.bf16.msra.mxu0 %v1115
    %1318 = vmatprep.subr.bf16.mxu0 %v1113
    %1319 = vmatpush1.bf16.msra.mxu0 %v1112
    %1320 = vmatprep.subr.bf16.mxu0 %v1158
    %1321 = vmatpush2.bf16.msra.mxu0 %v1157
    %1322 = vmatprep.subr.bf16.mxu0 %v1155
    %1323 = vmatpush2.bf16.msra.mxu0 %v1154
    %1324 = vmatprep.subr.bf16.mxu0 %v1152
    %1325 = vmatpush2.bf16.msra.mxu0 %v1151
    %1326 = vmatprep.subr.bf16.mxu0 %v1149
    %1327 = vmatpush2.bf16.msra.mxu0 %v1148
    %1328 = vmatprep.subr.bf16.mxu0 %v1146
    %1329 = vmatpush2.bf16.msra.mxu0 %v1145
    %1330 = vmatprep.subr.bf16.mxu0 %v1143
    %1331 = vmatpush2.bf16.msra.mxu0 %v1142
    %1332 = vmatprep.subr.bf16.mxu0 %v1140
    %1333 = vmatpush2.bf16.msra.mxu0 %v1139
    %1334 = vmatprep.subr.bf16.mxu0 %v1137
    %1335 = vmatpush2.bf16.msra.mxu0 %v1136
    %1336 = vmatprep.mubr.bf16.mxu0 %v661
    %1337 = vmatmul.mubr.bf16.gmra.mxu0 %v660
    %v1338 = vpop.f32.mrf.mxu0
    %v1339 = vadd.f32 %v614, %v1338
    %v1340 = vpop.f32.mrf.mxu0
    %v1341 = vadd.f32 %v616, %v1340
    %v1342 = vpop.f32.mrf.mxu0
    %v1343 = vpop.f32.mrf.mxu0
    %1344 = vdwg.mxu0
    %1345 = vmatprep.subr.bf16.mxu0 %v1182
    %1346 = vmatpush1.bf16.msra.mxu0 %v1181
    %1347 = vmatprep.subr.bf16.mxu0 %v1179
    %1348 = vmatpush1.bf16.msra.mxu0 %v1178
    %1349 = vmatprep.subr.bf16.mxu0 %v1176
    %1350 = vmatpush1.bf16.msra.mxu0 %v1175
    %1351 = vmatprep.subr.bf16.mxu0 %v1173
    %1352 = vmatpush1.bf16.msra.mxu0 %v1172
    %1353 = vmatprep.subr.bf16.mxu0 %v1170
    %1354 = vmatpush1.bf16.msra.mxu0 %v1169
    %1355 = vmatprep.subr.bf16.mxu0 %v1167
    %1356 = vmatpush1.bf16.msra.mxu0 %v1166
    %1357 = vmatprep.subr.bf16.mxu0 %v1164
    %1358 = vmatpush1.bf16.msra.mxu0 %v1163
    %1359 = vmatprep.subr.bf16.mxu0 %v1161
    %1360 = vmatpush1.bf16.msra.mxu0 %v1160
    %1361 = vmatprep.subr.bf16.mxu0 %v1206
    %1362 = vmatpush2.bf16.msra.mxu0 %v1205
    %1363 = vmatprep.subr.bf16.mxu0 %v1203
    %1364 = vmatpush2.bf16.msra.mxu0 %v1202
    %1365 = vmatprep.subr.bf16.mxu0 %v1200
    %1366 = vmatpush2.bf16.msra.mxu0 %v1199
    %1367 = vmatprep.subr.bf16.mxu0 %v1197
    %1368 = vmatpush2.bf16.msra.mxu0 %v1196
    %1369 = vmatprep.subr.bf16.mxu0 %v1194
    %1370 = vmatpush2.bf16.msra.mxu0 %v1193
    %1371 = vmatprep.subr.bf16.mxu0 %v1191
    %1372 = vmatpush2.bf16.msra.mxu0 %v1190
    %1373 = vmatprep.subr.bf16.mxu0 %v1188
    %1374 = vmatpush2.bf16.msra.mxu0 %v1187
    %1375 = vmatprep.subr.bf16.mxu0 %v1185
    %1376 = vmatpush2.bf16.msra.mxu0 %v1184
    %1377 = vmatprep.mubr.bf16.mxu0 %v663
    %1378 = vmatmul.mubr.bf16.gmra.mxu0 %v662
    %v1379 = vpop.f32.mrf.mxu0
    %v1380 = vadd.f32 %v1339, %v1379
    %v1381 = vpop.f32.mrf.mxu0
    %v1382 = vadd.f32 %v1341, %v1381
    %v1383 = vpop.f32.mrf.mxu0
    %v1384 = vpop.f32.mrf.mxu0
    %1385 = vdwg.mxu0
    %1386 = vmatprep.subr.bf16.mxu0 0
    %1387 = vmatpush1.bf16.msra.mxu0 %v1135
    %1388 = vmatprep.subr.bf16.mxu0 0
    %1389 = vmatpush1.bf16.msra.mxu0 %v1132
    %1390 = vmatprep.subr.bf16.mxu0 0
    %1391 = vmatpush1.bf16.msra.mxu0 %v1129
    %1392 = vmatprep.subr.bf16.mxu0 0
    %1393 = vmatpush1.bf16.msra.mxu0 %v1126
    %1394 = vmatprep.subr.bf16.mxu0 0
    %1395 = vmatpush1.bf16.msra.mxu0 %v1123
    %1396 = vmatprep.subr.bf16.mxu0 0
    %1397 = vmatpush1.bf16.msra.mxu0 %v1120
    %1398 = vmatprep.subr.bf16.mxu0 0
    %1399 = vmatpush1.bf16.msra.mxu0 %v1117
    %1400 = vmatprep.subr.bf16.mxu0 0
    %1401 = vmatpush1.bf16.msra.mxu0 %v1114
    %1402 = vmatprep.subr.bf16.mxu0 0
    %1403 = vmatpush2.bf16.msra.mxu0 %v1159
    %1404 = vmatprep.subr.bf16.mxu0 0
    %1405 = vmatpush2.bf16.msra.mxu0 %v1156
    %1406 = vmatprep.subr.bf16.mxu0 0
    %1407 = vmatpush2.bf16.msra.mxu0 %v1153
    %1408 = vmatprep.subr.bf16.mxu0 0
    %1409 = vmatpush2.bf16.msra.mxu0 %v1150
    %1410 = vmatprep.subr.bf16.mxu0 0
    %1411 = vmatpush2.bf16.msra.mxu0 %v1147
    %1412 = vmatprep.subr.bf16.mxu0 0
    %1413 = vmatpush2.bf16.msra.mxu0 %v1144
    %1414 = vmatprep.subr.bf16.mxu0 0
    %1415 = vmatpush2.bf16.msra.mxu0 %v1141
    %1416 = vmatprep.subr.bf16.mxu0 0
    %1417 = vmatpush2.bf16.msra.mxu0 %v1138
    %1418 = vmatprep.mubr.bf16.mxu0 %v661
    %1419 = vmatmul.mubr.bf16.gmra.mxu0 %v660
    %v1420 = vpop.f32.mrf.mxu0
    %v1421 = vadd.f32 %v655, %v1420
    %v1422 = vpop.f32.mrf.mxu0
    %v1423 = vpop.f32.mrf.mxu0
    %v1424 = vpop.f32.mrf.mxu0
    %1425 = vdwg.mxu0
    %1426 = vmatprep.subr.bf16.mxu0 0
    %1427 = vmatpush1.bf16.msra.mxu0 %v1183
    %1428 = vmatprep.subr.bf16.mxu0 0
    %1429 = vmatpush1.bf16.msra.mxu0 %v1180
    %1430 = vmatprep.subr.bf16.mxu0 0
    %1431 = vmatpush1.bf16.msra.mxu0 %v1177
    %1432 = vmatprep.subr.bf16.mxu0 0
    %1433 = vmatpush1.bf16.msra.mxu0 %v1174
    %1434 = vmatprep.subr.bf16.mxu0 0
    %1435 = vmatpush1.bf16.msra.mxu0 %v1171
    %1436 = vmatprep.subr.bf16.mxu0 0
    %1437 = vmatpush1.bf16.msra.mxu0 %v1168
    %1438 = vmatprep.subr.bf16.mxu0 0
    %1439 = vmatpush1.bf16.msra.mxu0 %v1165
    %1440 = vmatprep.subr.bf16.mxu0 0
    %1441 = vmatpush1.bf16.msra.mxu0 %v1162
    %1442 = vmatprep.subr.bf16.mxu0 0
    %1443 = vmatpush2.bf16.msra.mxu0 %v1207
    %1444 = vmatprep.subr.bf16.mxu0 0
    %1445 = vmatpush2.bf16.msra.mxu0 %v1204
    %1446 = vmatprep.subr.bf16.mxu0 0
    %1447 = vmatpush2.bf16.msra.mxu0 %v1201
    %1448 = vmatprep.subr.bf16.mxu0 0
    %1449 = vmatpush2.bf16.msra.mxu0 %v1198
    %1450 = vmatprep.subr.bf16.mxu0 0
    %1451 = vmatpush2.bf16.msra.mxu0 %v1195
    %1452 = vmatprep.subr.bf16.mxu0 0
    %1453 = vmatpush2.bf16.msra.mxu0 %v1192
    %1454 = vmatprep.subr.bf16.mxu0 0
    %1455 = vmatpush2.bf16.msra.mxu0 %v1189
    %1456 = vmatprep.subr.bf16.mxu0 0
    %1457 = vmatpush2.bf16.msra.mxu0 %v1186
    %1458 = vmatprep.mubr.bf16.mxu0 %v663
    %1459 = vmatmul.mubr.bf16.gmra.mxu0 %v662
    %v1460 = vpop.f32.mrf.mxu0
    %v1461 = vadd.f32 %v1421, %v1460
    %v1462 = vpop.f32.mrf.mxu0
    %v1463 = vpop.f32.mrf.mxu0
    %v1464 = vpop.f32.mrf.mxu0
    %1465 = vdwg.mxu0
    %v1466 = vld [vmem:[%s5] sm:$0x7]
    %v1468 = vlaneseq
    %v1469 = vshrl.u32 %v1468, 7
    %v1470 = vsub.s32 0, %v1469
    %v1471 = vrot.slane %v1466, %v1470
    %v1472 = vlaneseq
    %v1473 = vshrl.u32 %v1472, 7
    %v1474 = vsub.s32 1, %v1473
    %v1475 = vrot.slane %v1466, %v1474
    %v1476 = vlaneseq
    %v1477 = vshrl.u32 %v1476, 7
    %v1478 = vsub.s32 2, %v1477
    %v1479 = vrot.slane %v1466, %v1478
    %v1483 = vadd.f32 %v1380, %v1471
    %v1484 = vadd.f32 %v1382, %v1475
    %v1485 = vadd.f32 %v1461, %v1479
    %v1486 = vmax.f32 %v1483, 0.0
    %v1487 = vmax.f32 %v1484, 0.0
    %v1488 = vmax.f32 %v1485, 0.0
    %s1489 = sld [smem:[#allocation2]]
    %v1490 = vpack.c.bf16 %v1486, %v1486
    %v1491 = vpack.c.bf16 %v1487, %v1487
    %v1492 = vpack.c.bf16 %v1488, %v1488
    %v1493 = vld [vmem:[#allocation8] sm:$0xf]
    %v1494 = vld [vmem:[#allocation8 + $0x4] sm:$0xf]
    %v1495 = vld [vmem:[#allocation8 + $0x8] sm:$0xf]
    %v1496 = vld [vmem:[#allocation8 + $0xc] sm:$0xf]
    %v1497 = vld [vmem:[#allocation8 + $0x10] sm:$0xf]
    %v1498 = vld [vmem:[#allocation8 + $0x14] sm:$0xf]
    %v1499 = vld [vmem:[#allocation8 + $0x18] sm:$0xf]
    %v1500 = vld [vmem:[#allocation8 + $0x1c] sm:$0xf]
    %v1501 = vld [vmem:[#allocation8 + $0x20] sm:$0xf]
    %v1502 = vld [vmem:[#allocation8 + $0x24] sm:$0xf]
    %v1503 = vld [vmem:[#allocation8 + $0x28] sm:$0xf]
    %v1504 = vld [vmem:[#allocation8 + $0x2c] sm:$0xf]
    %v1505 = vld [vmem:[#allocation8 + $0x30] sm:$0xf]
    %v1506 = vld [vmem:[#allocation8 + $0x34] sm:$0xf]
    %v1507 = vld [vmem:[#allocation8 + $0x38] sm:$0xf]
    %v1508 = vld [vmem:[#allocation8 + $0x3c] sm:$0xf]
    %v1509 = vld [vmem:[#allocation8 + $0x40] sm:$0xf]
    %v1510 = vld [vmem:[#allocation8 + $0x44] sm:$0xf]
    %v1511 = vld [vmem:[#allocation8 + $0x48] sm:$0xf]
    %v1512 = vld [vmem:[#allocation8 + $0x4c] sm:$0xf]
    %v1513 = vld [vmem:[#allocation8 + $0x50] sm:$0xf]
    %v1514 = vld [vmem:[#allocation8 + $0x54] sm:$0xf]
    %v1515 = vld [vmem:[#allocation8 + $0x58] sm:$0xf]
    %v1516 = vld [vmem:[#allocation8 + $0x5c] sm:$0xf]
    %v1517 = vld [vmem:[#allocation8 + $0x60] sm:$0xf]
    %v1518 = vld [vmem:[#allocation8 + $0x64] sm:$0xf]
    %v1519 = vld [vmem:[#allocation8 + $0x68] sm:$0xf]
    %v1520 = vld [vmem:[#allocation8 + $0x6c] sm:$0xf]
    %v1521 = vld [vmem:[#allocation8 + $0x70] sm:$0xf]
    %v1522 = vld [vmem:[#allocation8 + $0x74] sm:$0xf]
    %v1523 = vld [vmem:[#allocation8 + $0x78] sm:$0xf]
    %v1524 = vld [vmem:[#allocation8 + $0x7c] sm:$0xf]
    %v1525 = vld [vmem:[#allocation8 + $0x80] sm:$0xf]
    %v1526 = vld [vmem:[#allocation8 + $0x84] sm:$0xf]
    %v1527 = vld [vmem:[#allocation8 + $0x88] sm:$0xf]
    %v1528 = vld [vmem:[#allocation8 + $0x8c] sm:$0xf]
    %v1529 = vld [vmem:[#allocation8 + $0x90] sm:$0xf]
    %v1530 = vld [vmem:[#allocation8 + $0x94] sm:$0xf]
    %v1531 = vld [vmem:[#allocation8 + $0x98] sm:$0xf]
    %v1532 = vld [vmem:[#allocation8 + $0x9c] sm:$0xf]
    %v1533 = vld [vmem:[#allocation8 + $0xa0] sm:$0xf]
    %v1534 = vld [vmem:[#allocation8 + $0xa4] sm:$0xf]
    %v1535 = vld [vmem:[#allocation8 + $0xa8] sm:$0xf]
    %v1536 = vld [vmem:[#allocation8 + $0xac] sm:$0xf]
    %v1537 = vld [vmem:[#allocation8 + $0xb0] sm:$0xf]
    %v1538 = vld [vmem:[#allocation8 + $0xb4] sm:$0xf]
    %v1539 = vld [vmem:[#allocation8 + $0xb8] sm:$0xf]
    %v1540 = vld [vmem:[#allocation8 + $0xbc] sm:$0xf]
    %v1541 = vstv %s1489
    %v1590 = vunpack.c.l.b16 %v1493
    %v1591 = vunpack.c.l.b16 %v1494
    %v1592 = vunpack.c.l.b16 %v1495
    %v1593 = vunpack.c.l.b16 %v1496
    %v1594 = vunpack.c.l.b16 %v1497
    %v1595 = vunpack.c.l.b16 %v1498
    %v1596 = vunpack.c.l.b16 %v1499
    %v1597 = vunpack.c.l.b16 %v1500
    %v1598 = vunpack.c.l.b16 %v1501
    %v1599 = vunpack.c.l.b16 %v1502
    %v1600 = vunpack.c.l.b16 %v1503
    %v1601 = vunpack.c.l.b16 %v1504
    %v1602 = vunpack.c.l.b16 %v1505
    %v1603 = vunpack.c.l.b16 %v1506
    %v1604 = vunpack.c.l.b16 %v1507
    %v1605 = vunpack.c.l.b16 %v1508
    %v1606 = vunpack.c.l.b16 %v1509
    %v1607 = vunpack.c.l.b16 %v1510
    %v1608 = vunpack.c.l.b16 %v1511
    %v1609 = vunpack.c.l.b16 %v1512
    %v1610 = vunpack.c.l.b16 %v1513
    %v1611 = vunpack.c.l.b16 %v1514
    %v1612 = vunpack.c.l.b16 %v1515
    %v1613 = vunpack.c.l.b16 %v1516
    %v1614 = vunpack.c.l.b16 %v1517
    %v1615 = vunpack.c.l.b16 %v1518
    %v1616 = vunpack.c.l.b16 %v1519
    %v1617 = vunpack.c.l.b16 %v1520
    %v1618 = vunpack.c.l.b16 %v1521
    %v1619 = vunpack.c.l.b16 %v1522
    %v1620 = vunpack.c.l.b16 %v1523
    %v1621 = vunpack.c.l.b16 %v1524
    %v1622 = vunpack.c.l.b16 %v1525
    %v1623 = vunpack.c.l.b16 %v1526
    %v1624 = vunpack.c.l.b16 %v1527
    %v1625 = vunpack.c.l.b16 %v1528
    %v1626 = vunpack.c.l.b16 %v1529
    %v1627 = vunpack.c.l.b16 %v1530
    %v1628 = vunpack.c.l.b16 %v1531
    %v1629 = vunpack.c.l.b16 %v1532
    %v1630 = vunpack.c.l.b16 %v1533
    %v1631 = vunpack.c.l.b16 %v1534
    %v1632 = vunpack.c.l.b16 %v1535
    %v1633 = vunpack.c.l.b16 %v1536
    %v1634 = vunpack.c.l.b16 %v1537
    %v1635 = vunpack.c.l.b16 %v1538
    %v1636 = vunpack.c.l.b16 %v1539
    %v1637 = vunpack.c.l.b16 %v1540
    %v1638 = vpack.c.b16 %v1591, %v1590
    %v1639 = vpack.c.b16 %v1593, %v1592
    %v1640 = vpack.c.b16 %v1595, %v1594
    %v1641 = vpack.c.b16 %v1597, %v1596
    %v1642 = vpack.c.b16 %v1599, %v1598
    %v1643 = vpack.c.b16 %v1601, %v1600
    %v1644 = vpack.c.b16 %v1603, %v1602
    %v1645 = vpack.c.b16 %v1605, %v1604
    %v1646 = vpack.c.b16 %v1607, %v1606
    %v1647 = vpack.c.b16 %v1609, %v1608
    %v1648 = vpack.c.b16 %v1611, %v1610
    %v1649 = vpack.c.b16 %v1613, %v1612
    %v1650 = vpack.c.b16 %v1615, %v1614
    %v1651 = vpack.c.b16 %v1617, %v1616
    %v1652 = vpack.c.b16 %v1619, %v1618
    %v1653 = vpack.c.b16 %v1621, %v1620
    %v1654 = vpack.c.b16 %v1623, %v1622
    %v1655 = vpack.c.b16 %v1625, %v1624
    %v1656 = vpack.c.b16 %v1627, %v1626
    %v1657 = vpack.c.b16 %v1629, %v1628
    %v1658 = vpack.c.b16 %v1631, %v1630
    %v1659 = vpack.c.b16 %v1633, %v1632
    %v1660 = vpack.c.b16 %v1635, %v1634
    %v1661 = vpack.c.b16 %v1637, %v1636
    %1686 = vmatprep.subr.bf16.mxu0 0
    %1687 = vmatpush1.bf16.msra.mxu0 %v1645
    %1688 = vmatprep.subr.bf16.mxu0 0
    %1689 = vmatpush1.bf16.msra.mxu0 %v1644
    %1690 = vmatprep.subr.bf16.mxu0 0
    %1691 = vmatpush1.bf16.msra.mxu0 %v1643
    %1692 = vmatprep.subr.bf16.mxu0 0
    %1693 = vmatpush1.bf16.msra.mxu0 %v1642
    %1694 = vmatprep.subr.bf16.mxu0 0
    %1695 = vmatpush1.bf16.msra.mxu0 %v1641
    %1696 = vmatprep.subr.bf16.mxu0 0
    %1697 = vmatpush1.bf16.msra.mxu0 %v1640
    %1698 = vmatprep.subr.bf16.mxu0 0
    %1699 = vmatpush1.bf16.msra.mxu0 %v1639
    %1700 = vmatprep.subr.bf16.mxu0 0
    %1701 = vmatpush1.bf16.msra.mxu0 %v1638
    %1702 = vmatprep.subr.bf16.mxu0 0
    %1703 = vmatpush2.bf16.msra.mxu0 %v1653
    %1704 = vmatprep.subr.bf16.mxu0 0
    %1705 = vmatpush2.bf16.msra.mxu0 %v1652
    %1706 = vmatprep.subr.bf16.mxu0 0
    %1707 = vmatpush2.bf16.msra.mxu0 %v1651
    %1708 = vmatprep.subr.bf16.mxu0 0
    %1709 = vmatpush2.bf16.msra.mxu0 %v1650
    %1710 = vmatprep.subr.bf16.mxu0 0
    %1711 = vmatpush2.bf16.msra.mxu0 %v1649
    %1712 = vmatprep.subr.bf16.mxu0 0
    %1713 = vmatpush2.bf16.msra.mxu0 %v1648
    %1714 = vmatprep.subr.bf16.mxu0 0
    %1715 = vmatpush2.bf16.msra.mxu0 %v1647
    %1716 = vmatprep.subr.bf16.mxu0 0
    %1717 = vmatpush2.bf16.msra.mxu0 %v1646
    %1718 = vmatprep.mubr.bf16.mxu0 %v1491
    %1719 = vmatmul.mubr.bf16.gmra.mxu0 %v1490
    %v1720 = vpop.f32.mrf.mxu0
    %v1721 = vadd.f32 %v1541, %v1720
    %v1722 = vpop.f32.mrf.mxu0
    %v1723 = vpop.f32.mrf.mxu0
    %v1724 = vpop.f32.mrf.mxu0
    %1725 = vdwg.mxu0
    %1726 = vmatprep.subr.bf16.mxu0 0
    %1727 = vmatpush1.bf16.msra.mxu0 %v1661
    %1728 = vmatprep.subr.bf16.mxu0 0
    %1729 = vmatpush1.bf16.msra.mxu0 %v1660
    %1730 = vmatprep.subr.bf16.mxu0 0
    %1731 = vmatpush1.bf16.msra.mxu0 %v1659
    %1732 = vmatprep.subr.bf16.mxu0 0
    %1733 = vmatpush1.bf16.msra.mxu0 %v1658
    %1734 = vmatprep.subr.bf16.mxu0 0
    %1735 = vmatpush1.bf16.msra.mxu0 %v1657
    %1736 = vmatprep.subr.bf16.mxu0 0
    %1737 = vmatpush1.bf16.msra.mxu0 %v1656
    %1738 = vmatprep.subr.bf16.mxu0 0
    %1739 = vmatpush1.bf16.msra.mxu0 %v1655
    %1740 = vmatprep.subr.bf16.mxu0 0
    %1741 = vmatpush1.bf16.msra.mxu0 %v1654
    %1742 = vmatprep.subr.bf16.mxu0 0
    %1743 = vmatpush2.bf16.msra.mxu0 0
    %1744 = vmatprep.subr.bf16.mxu0 0
    %1745 = vmatpush2.bf16.msra.mxu0 0
    %1746 = vmatprep.subr.bf16.mxu0 0
    %1747 = vmatpush2.bf16.msra.mxu0 0
    %1748 = vmatprep.subr.bf16.mxu0 0
    %1749 = vmatpush2.bf16.msra.mxu0 0
    %1750 = vmatprep.subr.bf16.mxu0 0
    %1751 = vmatpush2.bf16.msra.mxu0 0
    %1752 = vmatprep.subr.bf16.mxu0 0
    %1753 = vmatpush2.bf16.msra.mxu0 0
    %1754 = vmatprep.subr.bf16.mxu0 0
    %1755 = vmatpush2.bf16.msra.mxu0 0
    %1756 = vmatprep.subr.bf16.mxu0 0
    %1757 = vmatpush2.bf16.msra.mxu0 0
    %1758 = vmatprep.mubr.bf16.mxu0 0
    %1759 = vmatmul.mubr.bf16.gmra.mxu0 %v1492
    %v1760 = vpop.f32.mrf.mxu0
    %v1761 = vadd.f32 %v1721, %v1760
    %v1762 = vpop.f32.mrf.mxu0
    %v1763 = vpop.f32.mrf.mxu0
    %v1764 = vpop.f32.mrf.mxu0
    %1765 = vdwg.mxu0
    %1766 = vst [vmem:[#allocation10] sm:$0xff] %v1761
    // Predicated region
    $region50: #{critic_forward.1} parent=1 // pred_check
      _
    $region51: #{critic_forward.1} parent=1 // pred_check_branch
      %1768 = sbr.rel (0) target = $region53
    $region52: #{critic_forward.1} parent=1 // pred_region
      // Predicated region
      $region54: #{critic_forward.1} parent=52 // pred_check
        _
      $region55: #{critic_forward.1} parent=52 // pred_check_branch
        %1770 = sbr.rel (0) target = $region57
      $region56: #{critic_forward.1} parent=52 // pred_region
        // Predicated region
        $region58: #{critic_forward.1} parent=56 // pred_check
          _
        $region59: #{critic_forward.1} parent=56 // pred_check_branch
          %1772 = sbr.rel target = $region61
        $region60: #{critic_forward.1} parent=56 // pred_region
          // Predicated region
          $region73: #{critic_forward.1} parent=60 // pred_check
            _
          $region74: #{critic_forward.1} parent=60 // pred_check_branch
            %1788 = sbr.rel (0) target = $region76
          $region75: #{critic_forward.1} parent=60 // pred_region
            %s1790 = ssub.s32 4, 1
            loop: start=0, step=1, limit=1
            $region77: #{critic_forward.1} parent=75 // loop_pre_header
              _
            $region78: #{critic_forward.1} parent=75 // loop_header
              %s1792 = sphi 0, %s1796
              %p1793 = scmp.ge.s32.totalorder %s1792, 1
              %s1797 = sphi [#allocation10], [#allocation10]
              %s1798 = sphi %s8, %s8
            $region79: #{critic_forward.1} parent=75 // loop_header_branch
              %1795 = sbr.rel (%p1793) target = $region83
            $region80: #{critic_forward.1} parent=75 // loop_body
              %v1799 = vld [vmem:[%s1797] sm:%s1790]
              %1800 = vst [vmem:[%s1798] sm:%s1790] %v1799
            $region81: #{critic_forward.1} parent=75 // loop_footer
              %s1796 = sadd.s32 1, %s1792
            $region82: #{critic_forward.1} parent=75 // loop_footer_branch
              %1791 = sbr.rel target = $region78
            $region83: #{critic_forward.1} parent=75 // loop_exit
              _
          $region76: #{critic_forward.1} parent=60 // pred_fallthru
            _
        $region61: #{critic_forward.1} parent=56 // pred_fallthru
          _
        // Predicated region
        $region62: #{critic_forward.1} parent=56 // pred_check
          _
        $region63: #{critic_forward.1} parent=56 // pred_check_branch
          %1774 = sbr.rel (0) target = $region65
        $region64: #{critic_forward.1} parent=56 // pred_region
          %s1776 = ssub.s32 4, 1
          loop: start=0, step=1, limit=1
          $region66: #{critic_forward.1} parent=64 // loop_pre_header
            _
          $region67: #{critic_forward.1} parent=64 // loop_header
            %s1778 = sphi 0, %s1782
            %p1779 = scmp.ge.s32.totalorder %s1778, 1
            %s1783 = sphi [#allocation10], [#allocation10]
            %s1784 = sphi %s8, %s8
          $region68: #{critic_forward.1} parent=64 // loop_header_branch
            %1781 = sbr.rel (%p1779) target = $region72
          $region69: #{critic_forward.1} parent=64 // loop_body
            %v1785 = vld [vmem:[%s1783] sm:%s1776]
            %1786 = vst [vmem:[%s1784] sm:%s1776] %v1785
          $region70: #{critic_forward.1} parent=64 // loop_footer
            %s1782 = sadd.s32 1, %s1778
          $region71: #{critic_forward.1} parent=64 // loop_footer_branch
            %1777 = sbr.rel target = $region67
          $region72: #{critic_forward.1} parent=64 // loop_exit
            _
        $region65: #{critic_forward.1} parent=56 // pred_fallthru
          _
      $region57: #{critic_forward.1} parent=52 // pred_fallthru
        _
      %1801 = vnop
    $region53: #{critic_forward.1} parent=1 // pred_fallthru
      _
    // Predicated region
    $region84: #{critic_forward.1} parent=1 // pred_check
      _
    $region85: #{critic_forward.1} parent=1 // pred_check_branch
      %1803 = sbr.rel (0) target = $region87
    $region86: #{critic_forward.1} parent=1 // pred_region
      _
    $region87: #{critic_forward.1} parent=1 // pred_fallthru
      _
    %1804 = vsyncpa [#allocation4], 1
    %1805 = vsyncpa [#allocation6], 1
    %1806 = vsyncpa [#allocation9], 1

</llo_original>
